<compile_context>
chip_gen: v7x
topology: tpu7x:2x2x1
jax: 0.10.0
libtpu: 0.0.40
codegen_flags: <defaults>
</compile_context>

<pallas_src>
import math
import functools

import jax
import jax.numpy as jnp
import numpy as np
from jax import lax
from jax.experimental import pallas as pl
from jax.experimental.pallas import tpu as pltpu


# ----------------------------- helpers (usable inside kernels) --------------

def _layer_norm(x, gamma, beta, eps=1e-5):
    mean = jnp.mean(x, axis=-1, keepdims=True)
    xc = x - mean
    var = jnp.mean(xc * xc, axis=-1, keepdims=True)
    return xc * lax.rsqrt(var + eps) * gamma + beta


def _gelu(x):
    return 0.5 * x * (1.0 + jnp.tanh(math.sqrt(2.0 / math.pi)
                                     * (x + 0.044715 * x * x * x)))


# ----------------------------- fused decoder kernel -------------------------

def fused_decoder_kernel(ids_ref, rows_ref,               # scalar prefetch (SMEM)
                         emb_hbm,                          # HBM (pl.ANY)
                         wqkv_ref, bqkv_ref, wo_ref, bo_ref,
                         g1_ref, be1_ref, w1_ref, b1_ref,
                         w2_ref, b2_ref, g2_ref, be2_ref,
                         wout_ref, bout_ref,
                         out_ref,                          # (1, 1, OUT_PAD)
                         hidden_scr, pos_scr, gsem,        # VMEM / DMA scratch
                         *, n_heads):
    b = pl.program_id(0)                  # batch  (parallel)
    l = pl.program_id(1)                  # layer  (arbitrary, streamed weights)
    S, D = hidden_scr.shape
    Dh = D // n_heads

    # ---- layer 0: gather word+pos embedding rows straight from HBM ----------
    @pl.when(l == 0)
    def _():
        @pl.loop(0, S)
        def _(r):
            base = (b * S + r) * 2
            w_cp = pltpu.make_async_copy(
                emb_hbm.at[pl.ds(ids_ref[base], 1), :],
                hidden_scr.at[pl.ds(r, 1), :], gsem.at[0])
            p_cp = pltpu.make_async_copy(
                emb_hbm.at[pl.ds(ids_ref[base + 1], 1), :],
                pos_scr.at[pl.ds(r, 1), :], gsem.at[1])
            w_cp.start(); p_cp.start()
            w_cp.wait(); p_cp.wait()
        hidden_scr[...] = hidden_scr[...] + pos_scr[...]   # word + position emb

    hidden = hidden_scr[...]                               # (S, D) f32

    # ---- causal mask, matching reference: a*mask + -1e9*(1-mask) -------------
    row_i = lax.broadcasted_iota(jnp.int32, (S, S), 0)
    col_i = lax.broadcasted_iota(jnp.int32, (S, S), 1)
    mask = (col_i <= row_i).astype(jnp.float32)
    scale = 1.0 / math.sqrt(Dh)

    # ---- attention: QKV on the whole (S, D) tile; per-head softmax; the
    #      out-projection is folded into the head loop (accumulate in vregs,
    #      no per-head VMEM scratch).  n_heads is small & static -> static
    #      lane offsets (a traced fori index would force dynamic lane shuffles).
    qkv = jnp.dot(hidden, wqkv_ref[0],
                  preferred_element_type=jnp.float32) + bqkv_ref[0]
    wo = wo_ref[0]
    attn = jnp.zeros((S, D), jnp.float32)
    for h in range(n_heads):
        cs = h * Dh
        qh = qkv[:, cs:cs + Dh]
        kh = qkv[:, D + cs:D + cs + Dh]
        vh = qkv[:, 2 * D + cs:2 * D + cs + Dh]
        a = lax.dot_general(qh, kh, (((1,), (1,)), ((), ())),
                            preferred_element_type=jnp.float32) * scale
        a = a * mask + (-1e9) * (1.0 - mask)
        a = a - jnp.max(a, axis=-1, keepdims=True)
        e = jnp.exp(a)
        p = e / jnp.sum(e, axis=-1, keepdims=True)
        head_out = jnp.dot(p, vh, preferred_element_type=jnp.float32)
        attn = attn + jnp.dot(head_out, wo[cs:cs + Dh, :],
                              preferred_element_type=jnp.float32)
    attn = attn + bo_ref[0]

    # ---- residual + LN1 + FF + LN2, carried in the persistent VMEM scratch ---
    n1 = _layer_norm(attn + hidden, g1_ref[0], be1_ref[0])
    h1 = _gelu(jnp.dot(n1, w1_ref[0],
                       preferred_element_type=jnp.float32) + b1_ref[0])
    ff = jnp.dot(h1, w2_ref[0],
                 preferred_element_type=jnp.float32) + b2_ref[0]
    hidden_scr[...] = _layer_norm(ff + n1, g2_ref[0], be2_ref[0])

    # ---- last layer: eos-row dynamic slice + output Linear (lane-dense store)
    @pl.when(l == pl.num_programs(1) - 1)
    def _():
        last = hidden_scr[pl.ds(rows_ref[b], 1), :]        # (1, D)
        logits = jnp.dot(last, wout_ref[...],
                         preferred_element_type=jnp.float32) + bout_ref[...]
        out_ref[...] = logits.reshape(out_ref.shape).astype(out_ref.dtype)


# ----------------------------- wrapper ---------------------------------------

def transformer_decoder(x, params, n_blocks, n_heads, eos_token):
    B, S, _ = x.shape
    _, D = params["emb"].shape
    out_dim = params["wout"].shape[-1]
    OUT_PAD = ((out_dim + 127) // 128) * 128

    # lane-dense padded output Linear
    wout_pad = jnp.zeros((D, OUT_PAD), jnp.float32).at[:, :out_dim].set(params["wout"])
    bout_pad = jnp.zeros((1, OUT_PAD), jnp.float32).at[:, :out_dim].set(params["bout"])

    # scalar-prefetch operands (SMEM): interleaved [word, pos] ids, eos row/seq
    ids = x.reshape(B * S * 2).astype(jnp.int32)
    eos_pos = jnp.argmax(x[:, :, 0] == eos_token, axis=1).astype(jnp.int32)   # (B,)

    def layer_spec(shape):            # stream layer l's slice of a stacked param
        return pl.BlockSpec((1,) + tuple(shape[1:]),
                            lambda b, l, ids_r, rows_r: (l, 0, 0))

    def resident_spec(shape):         # constant block -> single-buffered if possible
        kwargs = {}
        if hasattr(pl, "Buffered"):
            kwargs = dict(pipeline_mode=pl.Buffered(1))
        try:
            return pl.BlockSpec(shape, lambda b, l, ids_r, rows_r: (0, 0), **kwargs)
        except TypeError:
            return pl.BlockSpec(shape, lambda b, l, ids_r, rows_r: (0, 0))

    stacked = ["wqkv", "bqkv", "wo", "bo", "g1", "be1",
               "w1", "b1", "w2", "b2", "g2", "be2"]

    # explicit scoped-VMEM budget: ~2 buffered layers + resident + scratch
    per_layer_bytes = sum(int(np.prod(params[k].shape[1:])) * 4 for k in stacked)
    resident_bytes = (D * OUT_PAD + OUT_PAD) * 4
    scratch_bytes = 2 * S * D * 4
    vmem_limit = int(min(48 * 2**20,
                         max(8 * 2**20,
                             4 * (2 * per_layer_bytes + resident_bytes
                                  + scratch_bytes))))

    grid_spec = pltpu.PrefetchScalarGridSpec(
        num_scalar_prefetch=2,
        grid=(B, n_blocks),
        in_specs=[
            pl.BlockSpec(memory_space=pl.ANY),        # embedding table stays in HBM
            layer_spec(params["wqkv"].shape), layer_spec(params["bqkv"].shape),
            layer_spec(params["wo"].shape), layer_spec(params["bo"].shape),
            layer_spec(params["g1"].shape), layer_spec(params["be1"].shape),
            layer_spec(params["w1"].shape), layer_spec(params["b1"].shape),
            layer_spec(params["w2"].shape), layer_spec(params["b2"].shape),
            layer_spec(params["g2"].shape), layer_spec(params["be2"].shape),
            resident_spec((D, OUT_PAD)), resident_spec((1, OUT_PAD)),
        ],
        out_specs=pl.BlockSpec((1, 1, OUT_PAD),
                               lambda b, l, ids_r, rows_r: (b, 0, 0)),
        scratch_shapes=[pltpu.VMEM((S, D), jnp.float32),     # hidden carry
                        pltpu.VMEM((S, D), jnp.float32),     # position-emb slab
                        pltpu.SemaphoreType.DMA((2,))],
    )

    kernel = functools.partial(fused_decoder_kernel, n_heads=n_heads)
    out = pl.pallas_call(
        kernel,
        out_shape=jax.ShapeDtypeStruct((B, 1, OUT_PAD), jnp.float32),
        grid_spec=grid_spec,
        compiler_params=pltpu.CompilerParams(
            dimension_semantics=("parallel", "arbitrary"),
            vmem_limit_bytes=vmem_limit),
    )(ids, eos_pos, params["emb"],
      params["wqkv"], params["bqkv"], params["wo"], params["bo"],
      params["g1"], params["be1"], params["w1"], params["b1"],
      params["w2"], params["b2"], params["g2"], params["be2"],
      wout_pad, bout_pad)
    return out.reshape(B, OUT_PAD)[:, :out_dim]


# ----------------------------- pure-JAX reference ---------------------------

def _ref_block(h, p, l, n_heads):
    B, S, D = h.shape
    Dh = D // n_heads
    qkv = h @ p["wqkv"][l] + p["bqkv"][l][0]
    q, k, v = qkv[..., :D], qkv[..., D:2 * D], qkv[..., 2 * D:]
    split = lambda t: t.reshape(B, S, n_heads, Dh).transpose(0, 2, 1, 3)
    q, k, v = split(q), split(k), split(v)
    a = jnp.einsum("bhqd,bhkd->bhqk", q, k) / math.sqrt(Dh)
    mask = jnp.tril(jnp.ones((S, S), jnp.float32))
    a = a * mask + (-1e9) * (1.0 - mask)
    a = jax.nn.softmax(a, axis=-1)
    attn = jnp.einsum("bhqk,bhkd->bhqd", a, v).transpose(0, 2, 1, 3).reshape(B, S, D)
    attn = attn @ p["wo"][l] + p["bo"][l][0]
    n1 = _layer_norm(attn + h, p["g1"][l][0], p["be1"][l][0])
    ff = _gelu(n1 @ p["w1"][l] + p["b1"][l][0]) @ p["w2"][l] + p["b2"][l][0]
    return _layer_norm(ff + n1, p["g2"][l][0], p["be2"][l][0])


def reference_forward(x, params, n_blocks, n_heads, eos_token):
    emb = params["emb"][x]                  # [B, S, 2, D]
    hidden = emb.sum(axis=2)                # [B, S, D]
    for l in range(n_blocks):
        hidden = _ref_block(hidden, params, l, n_heads)
    B, S, D = hidden.shape
    hidden_flat = hidden.reshape(-1, D)
    tokens_flat = x[..., 0].reshape(-1)
    idx = jnp.nonzero(tokens_flat == eos_token, size=B)[0]
    return hidden_flat[idx] @ params["wout"] + params["bout"][0]


# ----------------------------- parameter init -------------------------------

def init_params(key, vocab_size, max_seq_len, D, out_dim, n_blocks):
    qtty = vocab_size + max_seq_len + 1
    H = 3 * D
    f32 = jnp.float32
    std = 0.02
    k_emb, k_out, k_bout, *k_blocks = jax.random.split(key, 3 + n_blocks)

    def block_params(k):
        kq, ko, k1, k2, kbq, kbo = jax.random.split(k, 6)
        return dict(
            wqkv=(jax.random.normal(kq, (D, 3 * D)) * std).astype(f32),
            bqkv=(jax.random.normal(kbq, (1, 3 * D)) * std).astype(f32),
            wo=(jax.random.normal(ko, (D, D)) * std).astype(f32),
            bo=(jax.random.normal(kbo, (1, D)) * std).astype(f32),
            g1=jnp.ones((1, D), f32), be1=jnp.zeros((1, D), f32),
            w1=(jax.random.normal(k1, (D, H)) * std).astype(f32),
            b1=jnp.zeros((1, H), f32),
            w2=(jax.random.normal(k2, (H, D)) * std).astype(f32),
            b2=jnp.zeros((1, D), f32),
            g2=jnp.ones((1, D), f32), be2=jnp.zeros((1, D), f32),
        )

    blocks = [block_params(k) for k in k_blocks]
    params = {name: jnp.stack([b[name] for b in blocks]) for name in blocks[0]}
    params["emb"] = (jax.random.normal(k_emb, (qtty, D)) * std).astype(f32)
    params["wout"] = (jax.random.normal(k_out, (D, out_dim)) * std).astype(f32)
    params["bout"] = (jax.random.normal(k_bout, (1, out_dim)) * std).astype(f32)
    return params


# ----------------------------- main ------------------------------------------

if __name__ == "__main__":
    vocab_size, max_seq_len, D = 20, 8, 32
    n_blocks, n_heads, out_dim = 2, 4, 5
    eos_token, B = 3, 2

    key = jax.random.PRNGKey(0)
    pkey, xkey = jax.random.split(key)
    params = init_params(pkey, vocab_size, max_seq_len, D, out_dim, n_blocks)

    # word ids in [4, vocab) (avoid eos); exactly one eos per sequence, placed
    # at different positions to exercise the eos-row select.
    words = jax.random.randint(xkey, (B, max_seq_len), 4, vocab_size)
    words = words.at[0, max_seq_len - 3].set(eos_token)
    words = words.at[1, max_seq_len - 1].set(eos_token)
    positions = jnp.broadcast_to(vocab_size + jnp.arange(max_seq_len),
                                 (B, max_seq_len))
    x = jnp.stack([words, positions], axis=-1).astype(jnp.int32)   # [B, S, 2]

    fwd = jax.jit(functools.partial(transformer_decoder, n_blocks=n_blocks,
                                    n_heads=n_heads, eos_token=eos_token))
    logits = jax.block_until_ready(fwd(x, params))

    ref = reference_forward(x, params, n_blocks, n_heads, eos_token)
    np.testing.assert_allclose(np.asarray(logits), np.asarray(ref),
                               rtol=2e-3, atol=2e-3)
    print("KERNEL_OK")
</pallas_src>

<mosaic_0001>
module attributes {stable_mosaic.version = 11 : i64} {
  func.func @fused_decoder_kernel(%arg0: i32, %arg1: i32, %arg2: memref<32xi32, #tpu.memory_space<smem>>, %arg3: memref<2xi32, #tpu.memory_space<smem>>, %arg4: memref<29x32xf32, #tpu.memory_space<any>>, %arg5: memref<1x32x96xf32, #tpu.memory_space<vmem>>, %arg6: memref<1x1x96xf32, #tpu.memory_space<vmem>>, %arg7: memref<1x32x32xf32, #tpu.memory_space<vmem>>, %arg8: memref<1x1x32xf32, #tpu.memory_space<vmem>>, %arg9: memref<1x1x32xf32, #tpu.memory_space<vmem>>, %arg10: memref<1x1x32xf32, #tpu.memory_space<vmem>>, %arg11: memref<1x32x96xf32, #tpu.memory_space<vmem>>, %arg12: memref<1x1x96xf32, #tpu.memory_space<vmem>>, %arg13: memref<1x96x32xf32, #tpu.memory_space<vmem>>, %arg14: memref<1x1x32xf32, #tpu.memory_space<vmem>>, %arg15: memref<1x1x32xf32, #tpu.memory_space<vmem>>, %arg16: memref<1x1x32xf32, #tpu.memory_space<vmem>>, %arg17: memref<32x128xf32, #tpu.memory_space<vmem>>, %arg18: memref<1x128xf32, #tpu.memory_space<vmem>>, %arg19: memref<1x1x128xf32, #tpu.memory_space<vmem>>, %arg20: memref<8x32xf32, #tpu.memory_space<vmem>>, %arg21: memref<8x32xf32, #tpu.memory_space<vmem>>, %arg22: memref<2x!tpu.dma_semaphore, #tpu.memory_space<semaphore_mem>>) attributes {dimension_semantics = [#tpu.dimension_semantics<parallel>, #tpu.dimension_semantics<arbitrary>], iteration_bounds = array<i64: 2, 2>, scalar_prefetch = 2 : i64, scratch_operands = 3 : i64, tpu.core_type = #tpu.core_type<tc>, window_params = [{}, {transform_indices = @transform_1, window_bounds = array<i64: 1, 32, 96>}, {transform_indices = @transform_2, window_bounds = array<i64: 1, 1, 96>}, {transform_indices = @transform_3, window_bounds = array<i64: 1, 32, 32>}, {transform_indices = @transform_4, window_bounds = array<i64: 1, 1, 32>}, {transform_indices = @transform_5, window_bounds = array<i64: 1, 1, 32>}, {transform_indices = @transform_6, window_bounds = array<i64: 1, 1, 32>}, {transform_indices = @transform_7, window_bounds = array<i64: 1, 32, 96>}, {transform_indices = @transform_8, window_bounds = array<i64: 1, 1, 96>}, {transform_indices = @transform_9, window_bounds = array<i64: 1, 96, 32>}, {transform_indices = @transform_10, window_bounds = array<i64: 1, 1, 32>}, {transform_indices = @transform_11, window_bounds = array<i64: 1, 1, 32>}, {transform_indices = @transform_12, window_bounds = array<i64: 1, 1, 32>}, {pipeline_mode = #tpu.pipeline_mode<synchronous>, transform_indices = @transform_13, window_bounds = array<i64: 32, 128>}, {pipeline_mode = #tpu.pipeline_mode<synchronous>, transform_indices = @transform_14, window_bounds = array<i64: 1, 128>}, {transform_indices = @transform_15, window_bounds = array<i64: 1, 1, 128>}]} {
    %c0_i32 = arith.constant 0 : i32
    %0 = arith.cmpi eq, %arg1, %c0_i32 : i32
    %1 = arith.extui %0 : i1 to i32
    %c0_i32_0 = arith.constant 0 : i32
    %2 = arith.cmpi ne, %1, %c0_i32_0 : i32
    scf.if %2 {
      %c0_i32_90 = arith.constant 0 : i32
      %c8_i32 = arith.constant 8 : i32
      %204 = arith.addi %c0_i32_90, %c8_i32 : i32
      %c1_i32_91 = arith.constant 1 : i32
      scf.for %arg23 = %c0_i32_90 to %204 step %c1_i32_91  : i32 {
        %c1_i32_99 = arith.constant 1 : i32
        %209 = arith.muli %arg23, %c1_i32_99 : i32
        %c0_i32_100 = arith.constant 0 : i32
        %210 = arith.addi %c0_i32_100, %209 : i32
        %c8_i32_101 = arith.constant 8 : i32
        %211 = arith.muli %arg0, %c8_i32_101 : i32
        %212 = arith.addi %211, %210 : i32
        %c2_i32 = arith.constant 2 : i32
        %213 = arith.muli %212, %c2_i32 : i32
        %214 = arith.index_cast %213 : i32 to index
        %215 = memref.load %arg2[%214] : memref<32xi32, #tpu.memory_space<smem>>
        %c1_i32_102 = arith.constant 1 : i32
        %216 = arith.addi %213, %c1_i32_102 : i32
        %217 = arith.index_cast %216 : i32 to index
        %218 = memref.load %arg2[%217] : memref<32xi32, #tpu.memory_space<smem>>
        %c0_i32_103 = arith.constant 0 : i32
        %c0_i32_104 = arith.constant 0 : i32
        %219 = tpu.memref_slice %arg4[%215, %c0_i32_104] : memref<29x32xf32, #tpu.memory_space<any>> -> memref<1x32xf32, #tpu.memory_space<any>>
        %c0_i32_105 = arith.constant 0 : i32
        %220 = tpu.memref_slice %arg20[%210, %c0_i32_105] : memref<8x32xf32, #tpu.memory_space<vmem>> -> memref<1x32xf32, #tpu.memory_space<vmem>>
        %221 = tpu.memref_slice %arg22[%c0_i32_103] : memref<2x!tpu.dma_semaphore, #tpu.memory_space<semaphore_mem>> -> memref<1x!tpu.dma_semaphore, #tpu.memory_space<semaphore_mem>>
        %222 = tpu.memref_squeeze %221 : memref<1x!tpu.dma_semaphore, #tpu.memory_space<semaphore_mem>> -> memref<!tpu.dma_semaphore, #tpu.memory_space<semaphore_mem>>
        tpu.enqueue_dma source(%219 : memref<1x32xf32, #tpu.memory_space<any>>) target(%220 : memref<1x32xf32, #tpu.memory_space<vmem>>) target_semaphore(%222 : memref<!tpu.dma_semaphore, #tpu.memory_space<semaphore_mem>>)
        %c1_i32_106 = arith.constant 1 : i32
        %c0_i32_107 = arith.constant 0 : i32
        %223 = tpu.memref_slice %arg4[%218, %c0_i32_107] : memref<29x32xf32, #tpu.memory_space<any>> -> memref<1x32xf32, #tpu.memory_space<any>>
        %c0_i32_108 = arith.constant 0 : i32
        %224 = tpu.memref_slice %arg21[%210, %c0_i32_108] : memref<8x32xf32, #tpu.memory_space<vmem>> -> memref<1x32xf32, #tpu.memory_space<vmem>>
        %225 = tpu.memref_slice %arg22[%c1_i32_106] : memref<2x!tpu.dma_semaphore, #tpu.memory_space<semaphore_mem>> -> memref<1x!tpu.dma_semaphore, #tpu.memory_space<semaphore_mem>>
        %226 = tpu.memref_squeeze %225 : memref<1x!tpu.dma_semaphore, #tpu.memory_space<semaphore_mem>> -> memref<!tpu.dma_semaphore, #tpu.memory_space<semaphore_mem>>
        tpu.enqueue_dma source(%223 : memref<1x32xf32, #tpu.memory_space<any>>) target(%224 : memref<1x32xf32, #tpu.memory_space<vmem>>) target_semaphore(%226 : memref<!tpu.dma_semaphore, #tpu.memory_space<semaphore_mem>>)
        %c0_i32_109 = arith.constant 0 : i32
        %c0_i32_110 = arith.constant 0 : i32
        %227 = tpu.memref_slice %arg4[%215, %c0_i32_110] : memref<29x32xf32, #tpu.memory_space<any>> -> memref<1x32xf32, #tpu.memory_space<any>>
        %c0_i32_111 = arith.constant 0 : i32
        %228 = tpu.memref_slice %arg20[%210, %c0_i32_111] : memref<8x32xf32, #tpu.memory_space<vmem>> -> memref<1x32xf32, #tpu.memory_space<vmem>>
        %229 = tpu.memref_slice %arg22[%c0_i32_109] : memref<2x!tpu.dma_semaphore, #tpu.memory_space<semaphore_mem>> -> memref<1x!tpu.dma_semaphore, #tpu.memory_space<semaphore_mem>>
        %230 = tpu.memref_squeeze %229 : memref<1x!tpu.dma_semaphore, #tpu.memory_space<semaphore_mem>> -> memref<!tpu.dma_semaphore, #tpu.memory_space<semaphore_mem>>
        tpu.wait_dma2 semaphore(%230 : memref<!tpu.dma_semaphore, #tpu.memory_space<semaphore_mem>>) src(%227 : memref<1x32xf32, #tpu.memory_space<any>>) dst(%228 : memref<1x32xf32, #tpu.memory_space<vmem>>)
        %c1_i32_112 = arith.constant 1 : i32
        %c0_i32_113 = arith.constant 0 : i32
        %231 = tpu.memref_slice %arg4[%218, %c0_i32_113] : memref<29x32xf32, #tpu.memory_space<any>> -> memref<1x32xf32, #tpu.memory_space<any>>
        %c0_i32_114 = arith.constant 0 : i32
        %232 = tpu.memref_slice %arg21[%210, %c0_i32_114] : memref<8x32xf32, #tpu.memory_space<vmem>> -> memref<1x32xf32, #tpu.memory_space<vmem>>
        %233 = tpu.memref_slice %arg22[%c1_i32_112] : memref<2x!tpu.dma_semaphore, #tpu.memory_space<semaphore_mem>> -> memref<1x!tpu.dma_semaphore, #tpu.memory_space<semaphore_mem>>
        %234 = tpu.memref_squeeze %233 : memref<1x!tpu.dma_semaphore, #tpu.memory_space<semaphore_mem>> -> memref<!tpu.dma_semaphore, #tpu.memory_space<semaphore_mem>>
        tpu.wait_dma2 semaphore(%234 : memref<!tpu.dma_semaphore, #tpu.memory_space<semaphore_mem>>) src(%231 : memref<1x32xf32, #tpu.memory_space<any>>) dst(%232 : memref<1x32xf32, #tpu.memory_space<vmem>>)
      }
      %c8_i32_92 = arith.constant 8 : i32
      %c0_93 = arith.constant 0 : index
      %c0_94 = arith.constant 0 : index
      %205 = vector.load %arg20[%c0_93, %c0_94] : memref<8x32xf32, #tpu.memory_space<vmem>>, vector<8x32xf32>
      %c0_95 = arith.constant 0 : index
      %c0_96 = arith.constant 0 : index
      %206 = vector.load %arg21[%c0_95, %c0_96] : memref<8x32xf32, #tpu.memory_space<vmem>>, vector<8x32xf32>
      %207 = arith.addf %205, %206 : vector<8x32xf32>
      %c0_97 = arith.constant 0 : index
      %c0_98 = arith.constant 0 : index
      %208 = vector.load %arg20[%c0_97, %c0_98] : memref<8x32xf32, #tpu.memory_space<vmem>>, vector<8x32xf32>
      tpu.vector_store %arg20[%c0_97, %c0_98], %207 {strides = array<i32>} : memref<8x32xf32, #tpu.memory_space<vmem>>, vector<8x32xf32>,
    } else {
    }
    %c0 = arith.constant 0 : index
    %c0_1 = arith.constant 0 : index
    %3 = vector.load %arg20[%c0, %c0_1] : memref<8x32xf32, #tpu.memory_space<vmem>>, vector<8x32xf32>
    %4 = tpu.iota {dimensions = array<i32: 0>} : vector<8x8xi32>
    %5 = tpu.iota {dimensions = array<i32: 1>} : vector<8x8xi32>
    %6 = arith.cmpi sle, %5, %4 : vector<8x8xi32>
    %7 = arith.extui %6 : vector<8x8xi1> to vector<8x8xi32>
    %8 = arith.sitofp %7 : vector<8x8xi32> to vector<8x8xf32>
    %c0_2 = arith.constant 0 : index
    %c0_3 = arith.constant 0 : index
    %c0_4 = arith.constant 0 : index
    %9 = vector.load %arg5[%c0_2, %c0_3, %c0_4] : memref<1x32x96xf32, #tpu.memory_space<vmem>>, vector<1x32x96xf32>
    %10 = vector.shape_cast %9 : vector<1x32x96xf32> to vector<32x96xf32>
    %cst = arith.constant dense<0.000000e+00> : vector<8x96xf32>
    %11 = tpu.matmul %3, %10, %cst {dimension_numbers = #tpu.dot_dimension_numbers<[1], [0], [0], [1], [0, 0, 1, 1], [], []>} : vector<8x32xf32>, vector<32x96xf32>, vector<8x96xf32> -> vector<8x96xf32>
    %c0_5 = arith.constant 0 : index
    %c0_6 = arith.constant 0 : index
    %c0_7 = arith.constant 0 : index
    %12 = vector.load %arg6[%c0_5, %c0_6, %c0_7] : memref<1x1x96xf32, #tpu.memory_space<vmem>>, vector<1x1x96xf32>
    %13 = vector.shape_cast %12 : vector<1x1x96xf32> to vector<1x96xf32>
    %14 = vector.broadcast %13 : vector<1x96xf32> to vector<8x96xf32>
    %15 = arith.addf %11, %14 : vector<8x96xf32>
    %c0_8 = arith.constant 0 : index
    %c0_9 = arith.constant 0 : index
    %c0_10 = arith.constant 0 : index
    %16 = vector.load %arg7[%c0_8, %c0_9, %c0_10] : memref<1x32x32xf32, #tpu.memory_space<vmem>>, vector<1x32x32xf32>
    %17 = vector.shape_cast %16 : vector<1x32x32xf32> to vector<32x32xf32>
    %cst_11 = arith.constant 0.000000e+00 : f32
    %18 = vector.broadcast %cst_11 : f32 to vector<8x32xf32>
    %19 = vector.extract_strided_slice %15 {offsets = [0, 0], sizes = [8, 8], strides = [1, 1]} : vector<8x96xf32> to vector<8x8xf32>
    %20 = vector.extract_strided_slice %15 {offsets = [0, 32], sizes = [8, 8], strides = [1, 1]} : vector<8x96xf32> to vector<8x8xf32>
    %21 = vector.extract_strided_slice %15 {offsets = [0, 64], sizes = [8, 8], strides = [1, 1]} : vector<8x96xf32> to vector<8x8xf32>
    %cst_12 = arith.constant dense<0.000000e+00> : vector<8x8xf32>
    %22 = tpu.matmul %19, %20, %cst_12 {dimension_numbers = #tpu.dot_dimension_numbers<[1], [1], [0], [0], [0, 0, 1, 0], [], []>} : vector<8x8xf32>, vector<8x8xf32>, vector<8x8xf32> -> vector<8x8xf32>
    %cst_13 = arith.constant 0.353553385 : f32
    %23 = vector.broadcast %cst_13 : f32 to vector<8x8xf32>
    %24 = arith.mulf %22, %23 : vector<8x8xf32>
    %25 = arith.mulf %24, %8 : vector<8x8xf32>
    %cst_14 = arith.constant 1.000000e+00 : f32
    %26 = vector.broadcast %cst_14 : f32 to vector<8x8xf32>
    %27 = arith.subf %26, %8 : vector<8x8xf32>
    %cst_15 = arith.constant -1.000000e+09 : f32
    %28 = vector.broadcast %cst_15 : f32 to vector<8x8xf32>
    %29 = arith.mulf %28, %27 : vector<8x8xf32>
    %30 = arith.addf %25, %29 : vector<8x8xf32>
    %cst_16 = arith.constant dense<0xFF800000> : vector<8xf32>
    %31 = vector.multi_reduction <maximumf>, %30, %cst_16 [1] : vector<8x8xf32> to vector<8xf32>
    %32 = vector.shape_cast %31 : vector<8xf32> to vector<8x1xf32>
    %33 = vector.broadcast %32 : vector<8x1xf32> to vector<8x8xf32>
    %34 = arith.subf %30, %33 : vector<8x8xf32>
    %35 = math.exp %34 : vector<8x8xf32>
    %cst_17 = arith.constant dense<0.000000e+00> : vector<8xf32>
    %36 = vector.multi_reduction <add>, %35, %cst_17 [1] : vector<8x8xf32> to vector<8xf32>
    %37 = vector.shape_cast %36 : vector<8xf32> to vector<8x1xf32>
    %38 = vector.broadcast %37 : vector<8x1xf32> to vector<8x8xf32>
    %39 = arith.divf %35, %38 : vector<8x8xf32>
    %cst_18 = arith.constant dense<0.000000e+00> : vector<8x8xf32>
    %40 = tpu.matmul %39, %21, %cst_18 {dimension_numbers = #tpu.dot_dimension_numbers<[1], [0], [0], [1], [0, 0, 1, 1], [], []>} : vector<8x8xf32>, vector<8x8xf32>, vector<8x8xf32> -> vector<8x8xf32>
    %41 = vector.extract_strided_slice %17 {offsets = [0, 0], sizes = [8, 32], strides = [1, 1]} : vector<32x32xf32> to vector<8x32xf32>
    %cst_19 = arith.constant dense<0.000000e+00> : vector<8x32xf32>
    %42 = tpu.matmul %40, %41, %cst_19 {dimension_numbers = #tpu.dot_dimension_numbers<[1], [0], [0], [1], [0, 0, 1, 1], [], []>} : vector<8x8xf32>, vector<8x32xf32>, vector<8x32xf32> -> vector<8x32xf32>
    %43 = arith.addf %18, %42 : vector<8x32xf32>
    %44 = vector.extract_strided_slice %15 {offsets = [0, 8], sizes = [8, 8], strides = [1, 1]} : vector<8x96xf32> to vector<8x8xf32>
    %45 = vector.extract_strided_slice %15 {offsets = [0, 40], sizes = [8, 8], strides = [1, 1]} : vector<8x96xf32> to vector<8x8xf32>
    %46 = vector.extract_strided_slice %15 {offsets = [0, 72], sizes = [8, 8], strides = [1, 1]} : vector<8x96xf32> to vector<8x8xf32>
    %cst_20 = arith.constant dense<0.000000e+00> : vector<8x8xf32>
    %47 = tpu.matmul %44, %45, %cst_20 {dimension_numbers = #tpu.dot_dimension_numbers<[1], [1], [0], [0], [0, 0, 1, 0], [], []>} : vector<8x8xf32>, vector<8x8xf32>, vector<8x8xf32> -> vector<8x8xf32>
    %cst_21 = arith.constant 0.353553385 : f32
    %48 = vector.broadcast %cst_21 : f32 to vector<8x8xf32>
    %49 = arith.mulf %47, %48 : vector<8x8xf32>
    %50 = arith.mulf %49, %8 : vector<8x8xf32>
    %cst_22 = arith.constant 1.000000e+00 : f32
    %51 = vector.broadcast %cst_22 : f32 to vector<8x8xf32>
    %52 = arith.subf %51, %8 : vector<8x8xf32>
    %cst_23 = arith.constant -1.000000e+09 : f32
    %53 = vector.broadcast %cst_23 : f32 to vector<8x8xf32>
    %54 = arith.mulf %53, %52 : vector<8x8xf32>
    %55 = arith.addf %50, %54 : vector<8x8xf32>
    %cst_24 = arith.constant dense<0xFF800000> : vector<8xf32>
    %56 = vector.multi_reduction <maximumf>, %55, %cst_24 [1] : vector<8x8xf32> to vector<8xf32>
    %57 = vector.shape_cast %56 : vector<8xf32> to vector<8x1xf32>
    %58 = vector.broadcast %57 : vector<8x1xf32> to vector<8x8xf32>
    %59 = arith.subf %55, %58 : vector<8x8xf32>
    %60 = math.exp %59 : vector<8x8xf32>
    %cst_25 = arith.constant dense<0.000000e+00> : vector<8xf32>
    %61 = vector.multi_reduction <add>, %60, %cst_25 [1] : vector<8x8xf32> to vector<8xf32>
    %62 = vector.shape_cast %61 : vector<8xf32> to vector<8x1xf32>
    %63 = vector.broadcast %62 : vector<8x1xf32> to vector<8x8xf32>
    %64 = arith.divf %60, %63 : vector<8x8xf32>
    %cst_26 = arith.constant dense<0.000000e+00> : vector<8x8xf32>
    %65 = tpu.matmul %64, %46, %cst_26 {dimension_numbers = #tpu.dot_dimension_numbers<[1], [0], [0], [1], [0, 0, 1, 1], [], []>} : vector<8x8xf32>, vector<8x8xf32>, vector<8x8xf32> -> vector<8x8xf32>
    %66 = vector.extract_strided_slice %17 {offsets = [8, 0], sizes = [8, 32], strides = [1, 1]} : vector<32x32xf32> to vector<8x32xf32>
    %cst_27 = arith.constant dense<0.000000e+00> : vector<8x32xf32>
    %67 = tpu.matmul %65, %66, %cst_27 {dimension_numbers = #tpu.dot_dimension_numbers<[1], [0], [0], [1], [0, 0, 1, 1], [], []>} : vector<8x8xf32>, vector<8x32xf32>, vector<8x32xf32> -> vector<8x32xf32>
    %68 = arith.addf %43, %67 : vector<8x32xf32>
    %69 = vector.extract_strided_slice %15 {offsets = [0, 16], sizes = [8, 8], strides = [1, 1]} : vector<8x96xf32> to vector<8x8xf32>
    %70 = vector.extract_strided_slice %15 {offsets = [0, 48], sizes = [8, 8], strides = [1, 1]} : vector<8x96xf32> to vector<8x8xf32>
    %71 = vector.extract_strided_slice %15 {offsets = [0, 80], sizes = [8, 8], strides = [1, 1]} : vector<8x96xf32> to vector<8x8xf32>
    %cst_28 = arith.constant dense<0.000000e+00> : vector<8x8xf32>
    %72 = tpu.matmul %69, %70, %cst_28 {dimension_numbers = #tpu.dot_dimension_numbers<[1], [1], [0], [0], [0, 0, 1, 0], [], []>} : vector<8x8xf32>, vector<8x8xf32>, vector<8x8xf32> -> vector<8x8xf32>
    %cst_29 = arith.constant 0.353553385 : f32
    %73 = vector.broadcast %cst_29 : f32 to vector<8x8xf32>
    %74 = arith.mulf %72, %73 : vector<8x8xf32>
    %75 = arith.mulf %74, %8 : vector<8x8xf32>
    %cst_30 = arith.constant 1.000000e+00 : f32
    %76 = vector.broadcast %cst_30 : f32 to vector<8x8xf32>
    %77 = arith.subf %76, %8 : vector<8x8xf32>
    %cst_31 = arith.constant -1.000000e+09 : f32
    %78 = vector.broadcast %cst_31 : f32 to vector<8x8xf32>
    %79 = arith.mulf %78, %77 : vector<8x8xf32>
    %80 = arith.addf %75, %79 : vector<8x8xf32>
    %cst_32 = arith.constant dense<0xFF800000> : vector<8xf32>
    %81 = vector.multi_reduction <maximumf>, %80, %cst_32 [1] : vector<8x8xf32> to vector<8xf32>
    %82 = vector.shape_cast %81 : vector<8xf32> to vector<8x1xf32>
    %83 = vector.broadcast %82 : vector<8x1xf32> to vector<8x8xf32>
    %84 = arith.subf %80, %83 : vector<8x8xf32>
    %85 = math.exp %84 : vector<8x8xf32>
    %cst_33 = arith.constant dense<0.000000e+00> : vector<8xf32>
    %86 = vector.multi_reduction <add>, %85, %cst_33 [1] : vector<8x8xf32> to vector<8xf32>
    %87 = vector.shape_cast %86 : vector<8xf32> to vector<8x1xf32>
    %88 = vector.broadcast %87 : vector<8x1xf32> to vector<8x8xf32>
    %89 = arith.divf %85, %88 : vector<8x8xf32>
    %cst_34 = arith.constant dense<0.000000e+00> : vector<8x8xf32>
    %90 = tpu.matmul %89, %71, %cst_34 {dimension_numbers = #tpu.dot_dimension_numbers<[1], [0], [0], [1], [0, 0, 1, 1], [], []>} : vector<8x8xf32>, vector<8x8xf32>, vector<8x8xf32> -> vector<8x8xf32>
    %91 = vector.extract_strided_slice %17 {offsets = [16, 0], sizes = [8, 32], strides = [1, 1]} : vector<32x32xf32> to vector<8x32xf32>
    %cst_35 = arith.constant dense<0.000000e+00> : vector<8x32xf32>
    %92 = tpu.matmul %90, %91, %cst_35 {dimension_numbers = #tpu.dot_dimension_numbers<[1], [0], [0], [1], [0, 0, 1, 1], [], []>} : vector<8x8xf32>, vector<8x32xf32>, vector<8x32xf32> -> vector<8x32xf32>
    %93 = arith.addf %68, %92 : vector<8x32xf32>
    %94 = vector.extract_strided_slice %15 {offsets = [0, 24], sizes = [8, 8], strides = [1, 1]} : vector<8x96xf32> to vector<8x8xf32>
    %95 = vector.extract_strided_slice %15 {offsets = [0, 56], sizes = [8, 8], strides = [1, 1]} : vector<8x96xf32> to vector<8x8xf32>
    %96 = vector.extract_strided_slice %15 {offsets = [0, 88], sizes = [8, 8], strides = [1, 1]} : vector<8x96xf32> to vector<8x8xf32>
    %cst_36 = arith.constant dense<0.000000e+00> : vector<8x8xf32>
    %97 = tpu.matmul %94, %95, %cst_36 {dimension_numbers = #tpu.dot_dimension_numbers<[1], [1], [0], [0], [0, 0, 1, 0], [], []>} : vector<8x8xf32>, vector<8x8xf32>, vector<8x8xf32> -> vector<8x8xf32>
    %cst_37 = arith.constant 0.353553385 : f32
    %98 = vector.broadcast %cst_37 : f32 to vector<8x8xf32>
    %99 = arith.mulf %97, %98 : vector<8x8xf32>
    %100 = arith.mulf %99, %8 : vector<8x8xf32>
    %cst_38 = arith.constant 1.000000e+00 : f32
    %101 = vector.broadcast %cst_38 : f32 to vector<8x8xf32>
    %102 = arith.subf %101, %8 : vector<8x8xf32>
    %cst_39 = arith.constant -1.000000e+09 : f32
    %103 = vector.broadcast %cst_39 : f32 to vector<8x8xf32>
    %104 = arith.mulf %103, %102 : vector<8x8xf32>
    %105 = arith.addf %100, %104 : vector<8x8xf32>
    %cst_40 = arith.constant dense<0xFF800000> : vector<8xf32>
    %106 = vector.multi_reduction <maximumf>, %105, %cst_40 [1] : vector<8x8xf32> to vector<8xf32>
    %107 = vector.shape_cast %106 : vector<8xf32> to vector<8x1xf32>
    %108 = vector.broadcast %107 : vector<8x1xf32> to vector<8x8xf32>
    %109 = arith.subf %105, %108 : vector<8x8xf32>
    %110 = math.exp %109 : vector<8x8xf32>
    %cst_41 = arith.constant dense<0.000000e+00> : vector<8xf32>
    %111 = vector.multi_reduction <add>, %110, %cst_41 [1] : vector<8x8xf32> to vector<8xf32>
    %112 = vector.shape_cast %111 : vector<8xf32> to vector<8x1xf32>
    %113 = vector.broadcast %112 : vector<8x1xf32> to vector<8x8xf32>
    %114 = arith.divf %110, %113 : vector<8x8xf32>
    %cst_42 = arith.constant dense<0.000000e+00> : vector<8x8xf32>
    %115 = tpu.matmul %114, %96, %cst_42 {dimension_numbers = #tpu.dot_dimension_numbers<[1], [0], [0], [1], [0, 0, 1, 1], [], []>} : vector<8x8xf32>, vector<8x8xf32>, vector<8x8xf32> -> vector<8x8xf32>
    %116 = vector.extract_strided_slice %17 {offsets = [24, 0], sizes = [8, 32], strides = [1, 1]} : vector<32x32xf32> to vector<8x32xf32>
    %cst_43 = arith.constant dense<0.000000e+00> : vector<8x32xf32>
    %117 = tpu.matmul %115, %116, %cst_43 {dimension_numbers = #tpu.dot_dimension_numbers<[1], [0], [0], [1], [0, 0, 1, 1], [], []>} : vector<8x8xf32>, vector<8x32xf32>, vector<8x32xf32> -> vector<8x32xf32>
    %118 = arith.addf %93, %117 : vector<8x32xf32>
    %c0_44 = arith.constant 0 : index
    %c0_45 = arith.constant 0 : index
    %c0_46 = arith.constant 0 : index
    %119 = vector.load %arg8[%c0_44, %c0_45, %c0_46] : memref<1x1x32xf32, #tpu.memory_space<vmem>>, vector<1x1x32xf32>
    %120 = vector.shape_cast %119 : vector<1x1x32xf32> to vector<1x32xf32>
    %121 = vector.broadcast %120 : vector<1x32xf32> to vector<8x32xf32>
    %122 = arith.addf %118, %121 : vector<8x32xf32>
    %123 = arith.addf %122, %3 : vector<8x32xf32>
    %c0_47 = arith.constant 0 : index
    %c0_48 = arith.constant 0 : index
    %c0_49 = arith.constant 0 : index
    %124 = vector.load %arg9[%c0_47, %c0_48, %c0_49] : memref<1x1x32xf32, #tpu.memory_space<vmem>>, vector<1x1x32xf32>
    %125 = vector.shape_cast %124 : vector<1x1x32xf32> to vector<1x32xf32>
    %c0_50 = arith.constant 0 : index
    %c0_51 = arith.constant 0 : index
    %c0_52 = arith.constant 0 : index
    %126 = vector.load %arg10[%c0_50, %c0_51, %c0_52] : memref<1x1x32xf32, #tpu.memory_space<vmem>>, vector<1x1x32xf32>
    %127 = vector.shape_cast %126 : vector<1x1x32xf32> to vector<1x32xf32>
    %cst_53 = arith.constant dense<0.000000e+00> : vector<8xf32>
    %128 = vector.multi_reduction <add>, %123, %cst_53 [1] : vector<8x32xf32> to vector<8xf32>
    %129 = vector.shape_cast %128 : vector<8xf32> to vector<8x1xf32>
    %cst_54 = arith.constant 3.200000e+01 : f32
    %130 = vector.broadcast %cst_54 : f32 to vector<8x1xf32>
    %131 = arith.divf %129, %130 : vector<8x1xf32>
    %132 = vector.broadcast %131 : vector<8x1xf32> to vector<8x32xf32>
    %133 = arith.subf %123, %132 : vector<8x32xf32>
    %134 = arith.mulf %133, %133 : vector<8x32xf32>
    %cst_55 = arith.constant dense<0.000000e+00> : vector<8xf32>
    %135 = vector.multi_reduction <add>, %134, %cst_55 [1] : vector<8x32xf32> to vector<8xf32>
    %136 = vector.shape_cast %135 : vector<8xf32> to vector<8x1xf32>
    %cst_56 = arith.constant 3.200000e+01 : f32
    %137 = vector.broadcast %cst_56 : f32 to vector<8x1xf32>
    %138 = arith.divf %136, %137 : vector<8x1xf32>
    %cst_57 = arith.constant 9.99999974E-6 : f32
    %139 = vector.broadcast %cst_57 : f32 to vector<8x1xf32>
    %140 = arith.addf %138, %139 : vector<8x1xf32>
    %141 = math.rsqrt %140 : vector<8x1xf32>
    %142 = vector.broadcast %141 : vector<8x1xf32> to vector<8x32xf32>
    %143 = arith.mulf %133, %142 : vector<8x32xf32>
    %144 = vector.broadcast %125 : vector<1x32xf32> to vector<8x32xf32>
    %145 = arith.mulf %143, %144 : vector<8x32xf32>
    %146 = vector.broadcast %127 : vector<1x32xf32> to vector<8x32xf32>
    %147 = arith.addf %145, %146 : vector<8x32xf32>
    %c0_58 = arith.constant 0 : index
    %c0_59 = arith.constant 0 : index
    %c0_60 = arith.constant 0 : index
    %148 = vector.load %arg11[%c0_58, %c0_59, %c0_60] : memref<1x32x96xf32, #tpu.memory_space<vmem>>, vector<1x32x96xf32>
    %149 = vector.shape_cast %148 : vector<1x32x96xf32> to vector<32x96xf32>
    %cst_61 = arith.constant dense<0.000000e+00> : vector<8x96xf32>
    %150 = tpu.matmul %147, %149, %cst_61 {dimension_numbers = #tpu.dot_dimension_numbers<[1], [0], [0], [1], [0, 0, 1, 1], [], []>} : vector<8x32xf32>, vector<32x96xf32>, vector<8x96xf32> -> vector<8x96xf32>
    %c0_62 = arith.constant 0 : index
    %c0_63 = arith.constant 0 : index
    %c0_64 = arith.constant 0 : index
    %151 = vector.load %arg12[%c0_62, %c0_63, %c0_64] : memref<1x1x96xf32, #tpu.memory_space<vmem>>, vector<1x1x96xf32>
    %152 = vector.shape_cast %151 : vector<1x1x96xf32> to vector<1x96xf32>
    %153 = vector.broadcast %152 : vector<1x96xf32> to vector<8x96xf32>
    %154 = arith.addf %150, %153 : vector<8x96xf32>
    %cst_65 = arith.constant 5.000000e-01 : f32
    %155 = vector.broadcast %cst_65 : f32 to vector<8x96xf32>
    %156 = arith.mulf %155, %154 : vector<8x96xf32>
    %cst_66 = arith.constant 4.471500e-02 : f32
    %157 = vector.broadcast %cst_66 : f32 to vector<8x96xf32>
    %158 = arith.mulf %157, %154 : vector<8x96xf32>
    %159 = arith.mulf %158, %154 : vector<8x96xf32>
    %160 = arith.mulf %159, %154 : vector<8x96xf32>
    %161 = arith.addf %154, %160 : vector<8x96xf32>
    %cst_67 = arith.constant 0.797884583 : f32
    %162 = vector.broadcast %cst_67 : f32 to vector<8x96xf32>
    %163 = arith.mulf %162, %161 : vector<8x96xf32>
    %164 = math.tanh %163 : vector<8x96xf32>
    %cst_68 = arith.constant 1.000000e+00 : f32
    %165 = vector.broadcast %cst_68 : f32 to vector<8x96xf32>
    %166 = arith.addf %165, %164 : vector<8x96xf32>
    %167 = arith.mulf %156, %166 : vector<8x96xf32>
    %c0_69 = arith.constant 0 : index
    %c0_70 = arith.constant 0 : index
    %c0_71 = arith.constant 0 : index
    %168 = vector.load %arg13[%c0_69, %c0_70, %c0_71] : memref<1x96x32xf32, #tpu.memory_space<vmem>>, vector<1x96x32xf32>
    %169 = vector.shape_cast %168 : vector<1x96x32xf32> to vector<96x32xf32>
    %cst_72 = arith.constant dense<0.000000e+00> : vector<8x32xf32>
    %170 = tpu.matmul %167, %169, %cst_72 {dimension_numbers = #tpu.dot_dimension_numbers<[1], [0], [0], [1], [0, 0, 1, 1], [], []>} : vector<8x96xf32>, vector<96x32xf32>, vector<8x32xf32> -> vector<8x32xf32>
    %c0_73 = arith.constant 0 : index
    %c0_74 = arith.constant 0 : index
    %c0_75 = arith.constant 0 : index
    %171 = vector.load %arg14[%c0_73, %c0_74, %c0_75] : memref<1x1x32xf32, #tpu.memory_space<vmem>>, vector<1x1x32xf32>
    %172 = vector.shape_cast %171 : vector<1x1x32xf32> to vector<1x32xf32>
    %173 = vector.broadcast %172 : vector<1x32xf32> to vector<8x32xf32>
    %174 = arith.addf %170, %173 : vector<8x32xf32>
    %175 = arith.addf %174, %147 : vector<8x32xf32>
    %c0_76 = arith.constant 0 : index
    %c0_77 = arith.constant 0 : index
    %c0_78 = arith.constant 0 : index
    %176 = vector.load %arg15[%c0_76, %c0_77, %c0_78] : memref<1x1x32xf32, #tpu.memory_space<vmem>>, vector<1x1x32xf32>
    %177 = vector.shape_cast %176 : vector<1x1x32xf32> to vector<1x32xf32>
    %c0_79 = arith.constant 0 : index
    %c0_80 = arith.constant 0 : index
    %c0_81 = arith.constant 0 : index
    %178 = vector.load %arg16[%c0_79, %c0_80, %c0_81] : memref<1x1x32xf32, #tpu.memory_space<vmem>>, vector<1x1x32xf32>
    %179 = vector.shape_cast %178 : vector<1x1x32xf32> to vector<1x32xf32>
    %cst_82 = arith.constant dense<0.000000e+00> : vector<8xf32>
    %180 = vector.multi_reduction <add>, %175, %cst_82 [1] : vector<8x32xf32> to vector<8xf32>
    %181 = vector.shape_cast %180 : vector<8xf32> to vector<8x1xf32>
    %cst_83 = arith.constant 3.200000e+01 : f32
    %182 = vector.broadcast %cst_83 : f32 to vector<8x1xf32>
    %183 = arith.divf %181, %182 : vector<8x1xf32>
    %184 = vector.broadcast %183 : vector<8x1xf32> to vector<8x32xf32>
    %185 = arith.subf %175, %184 : vector<8x32xf32>
    %186 = arith.mulf %185, %185 : vector<8x32xf32>
    %cst_84 = arith.constant dense<0.000000e+00> : vector<8xf32>
    %187 = vector.multi_reduction <add>, %186, %cst_84 [1] : vector<8x32xf32> to vector<8xf32>
    %188 = vector.shape_cast %187 : vector<8xf32> to vector<8x1xf32>
    %cst_85 = arith.constant 3.200000e+01 : f32
    %189 = vector.broadcast %cst_85 : f32 to vector<8x1xf32>
    %190 = arith.divf %188, %189 : vector<8x1xf32>
    %cst_86 = arith.constant 9.99999974E-6 : f32
    %191 = vector.broadcast %cst_86 : f32 to vector<8x1xf32>
    %192 = arith.addf %190, %191 : vector<8x1xf32>
    %193 = math.rsqrt %192 : vector<8x1xf32>
    %194 = vector.broadcast %193 : vector<8x1xf32> to vector<8x32xf32>
    %195 = arith.mulf %185, %194 : vector<8x32xf32>
    %196 = vector.broadcast %177 : vector<1x32xf32> to vector<8x32xf32>
    %197 = arith.mulf %195, %196 : vector<8x32xf32>
    %198 = vector.broadcast %179 : vector<1x32xf32> to vector<8x32xf32>
    %199 = arith.addf %197, %198 : vector<8x32xf32>
    %c0_87 = arith.constant 0 : index
    %c0_88 = arith.constant 0 : index
    %200 = vector.load %arg20[%c0_87, %c0_88] : memref<8x32xf32, #tpu.memory_space<vmem>>, vector<8x32xf32>
    tpu.vector_store %arg20[%c0_87, %c0_88], %199 {strides = array<i32>} : memref<8x32xf32, #tpu.memory_space<vmem>>, vector<8x32xf32>,
    %c1_i32 = arith.constant 1 : i32
    %201 = arith.cmpi eq, %arg1, %c1_i32 : i32
    %202 = arith.extui %201 : i1 to i32
    %c0_i32_89 = arith.constant 0 : i32
    %203 = arith.cmpi ne, %202, %c0_i32_89 : i32
    scf.if %203 {
      %204 = arith.index_cast %arg0 : i32 to index
      %205 = memref.load %arg3[%204] : memref<2xi32, #tpu.memory_space<smem>>
      %206 = arith.index_cast %205 : i32 to index
      %c0_90 = arith.constant 0 : index
      %207 = vector.load %arg20[%206, %c0_90] : memref<8x32xf32, #tpu.memory_space<vmem>>, vector<1x32xf32>
      %c0_91 = arith.constant 0 : index
      %c0_92 = arith.constant 0 : index
      %208 = vector.load %arg17[%c0_91, %c0_92] : memref<32x128xf32, #tpu.memory_space<vmem>>, vector<32x128xf32>
      %cst_93 = arith.constant dense<0.000000e+00> : vector<1x128xf32>
      %209 = tpu.matmul %207, %208, %cst_93 {dimension_numbers = #tpu.dot_dimension_numbers<[1], [0], [0], [1], [0, 0, 1, 1], [], []>} : vector<1x32xf32>, vector<32x128xf32>, vector<1x128xf32> -> vector<1x128xf32>
      %c0_94 = arith.constant 0 : index
      %c0_95 = arith.constant 0 : index
      %210 = vector.load %arg18[%c0_94, %c0_95] : memref<1x128xf32, #tpu.memory_space<vmem>>, vector<1x128xf32>
      %211 = arith.addf %209, %210 : vector<1x128xf32>
      %212 = vector.shape_cast %211 : vector<1x128xf32> to vector<1x1x128xf32>
      %c0_96 = arith.constant 0 : index
      %c0_97 = arith.constant 0 : index
      %c0_98 = arith.constant 0 : index
      %213 = vector.load %arg19[%c0_96, %c0_97, %c0_98] : memref<1x1x128xf32, #tpu.memory_space<vmem>>, vector<1x1x128xf32>
      tpu.vector_store %arg19[%c0_96, %c0_97, %c0_98], %212 {strides = array<i32>} : memref<1x1x128xf32, #tpu.memory_space<vmem>>, vector<1x1x128xf32>,
    } else {
    }
    return
  }
  func.func @transform_1(%arg0: i32, %arg1: i32, %arg2: memref<32xi32, #tpu.memory_space<smem>>, %arg3: memref<2xi32, #tpu.memory_space<smem>>) -> (i32, i32, i32) {
    %c0_i32 = arith.constant 0 : i32
    %c0_i32_0 = arith.constant 0 : i32
    %c0_i32_1 = arith.constant 0 : i32
    return %arg1, %c0_i32, %c0_i32_0 : i32, i32, i32
  }
  func.func @transform_2(%arg0: i32, %arg1: i32, %arg2: memref<32xi32, #tpu.memory_space<smem>>, %arg3: memref<2xi32, #tpu.memory_space<smem>>) -> (i32, i32, i32) {
    %c0_i32 = arith.constant 0 : i32
    %c0_i32_0 = arith.constant 0 : i32
    %c0_i32_1 = arith.constant 0 : i32
    return %arg1, %c0_i32, %c0_i32_0 : i32, i32, i32
  }
  func.func @transform_3(%arg0: i32, %arg1: i32, %arg2: memref<32xi32, #tpu.memory_space<smem>>, %arg3: memref<2xi32, #tpu.memory_space<smem>>) -> (i32, i32, i32) {
    %c0_i32 = arith.constant 0 : i32
    %c0_i32_0 = arith.constant 0 : i32
    %c0_i32_1 = arith.constant 0 : i32
    return %arg1, %c0_i32, %c0_i32_0 : i32, i32, i32
  }
  func.func @transform_4(%arg0: i32, %arg1: i32, %arg2: memref<32xi32, #tpu.memory_space<smem>>, %arg3: memref<2xi32, #tpu.memory_space<smem>>) -> (i32, i32, i32) {
    %c0_i32 = arith.constant 0 : i32
    %c0_i32_0 = arith.constant 0 : i32
    %c0_i32_1 = arith.constant 0 : i32
    return %arg1, %c0_i32, %c0_i32_0 : i32, i32, i32
  }
  func.func @transform_5(%arg0: i32, %arg1: i32, %arg2: memref<32xi32, #tpu.memory_space<smem>>, %arg3: memref<2xi32, #tpu.memory_space<smem>>) -> (i32, i32, i32) {
    %c0_i32 = arith.constant 0 : i32
    %c0_i32_0 = arith.constant 0 : i32
    %c0_i32_1 = arith.constant 0 : i32
    return %arg1, %c0_i32, %c0_i32_0 : i32, i32, i32
  }
  func.func @transform_6(%arg0: i32, %arg1: i32, %arg2: memref<32xi32, #tpu.memory_space<smem>>, %arg3: memref<2xi32, #tpu.memory_space<smem>>) -> (i32, i32, i32) {
    %c0_i32 = arith.constant 0 : i32
    %c0_i32_0 = arith.constant 0 : i32
    %c0_i32_1 = arith.constant 0 : i32
    return %arg1, %c0_i32, %c0_i32_0 : i32, i32, i32
  }
  func.func @transform_7(%arg0: i32, %arg1: i32, %arg2: memref<32xi32, #tpu.memory_space<smem>>, %arg3: memref<2xi32, #tpu.memory_space<smem>>) -> (i32, i32, i32) {
    %c0_i32 = arith.constant 0 : i32
    %c0_i32_0 = arith.constant 0 : i32
    %c0_i32_1 = arith.constant 0 : i32
    return %arg1, %c0_i32, %c0_i32_0 : i32, i32, i32
  }
  func.func @transform_8(%arg0: i32, %arg1: i32, %arg2: memref<32xi32, #tpu.memory_space<smem>>, %arg3: memref<2xi32, #tpu.memory_space<smem>>) -> (i32, i32, i32) {
    %c0_i32 = arith.constant 0 : i32
    %c0_i32_0 = arith.constant 0 : i32
    %c0_i32_1 = arith.constant 0 : i32
    return %arg1, %c0_i32, %c0_i32_0 : i32, i32, i32
  }
  func.func @transform_9(%arg0: i32, %arg1: i32, %arg2: memref<32xi32, #tpu.memory_space<smem>>, %arg3: memref<2xi32, #tpu.memory_space<smem>>) -> (i32, i32, i32) {
    %c0_i32 = arith.constant 0 : i32
    %c0_i32_0 = arith.constant 0 : i32
    %c0_i32_1 = arith.constant 0 : i32
    return %arg1, %c0_i32, %c0_i32_0 : i32, i32, i32
  }
  func.func @transform_10(%arg0: i32, %arg1: i32, %arg2: memref<32xi32, #tpu.memory_space<smem>>, %arg3: memref<2xi32, #tpu.memory_space<smem>>) -> (i32, i32, i32) {
    %c0_i32 = arith.constant 0 : i32
    %c0_i32_0 = arith.constant 0 : i32
    %c0_i32_1 = arith.constant 0 : i32
    return %arg1, %c0_i32, %c0_i32_0 : i32, i32, i32
  }
  func.func @transform_11(%arg0: i32, %arg1: i32, %arg2: memref<32xi32, #tpu.memory_space<smem>>, %arg3: memref<2xi32, #tpu.memory_space<smem>>) -> (i32, i32, i32) {
    %c0_i32 = arith.constant 0 : i32
    %c0_i32_0 = arith.constant 0 : i32
    %c0_i32_1 = arith.constant 0 : i32
    return %arg1, %c0_i32, %c0_i32_0 : i32, i32, i32
  }
  func.func @transform_12(%arg0: i32, %arg1: i32, %arg2: memref<32xi32, #tpu.memory_space<smem>>, %arg3: memref<2xi32, #tpu.memory_space<smem>>) -> (i32, i32, i32) {
    %c0_i32 = arith.constant 0 : i32
    %c0_i32_0 = arith.constant 0 : i32
    %c0_i32_1 = arith.constant 0 : i32
    return %arg1, %c0_i32, %c0_i32_0 : i32, i32, i32
  }
  func.func @transform_13(%arg0: i32, %arg1: i32, %arg2: memref<32xi32, #tpu.memory_space<smem>>, %arg3: memref<2xi32, #tpu.memory_space<smem>>) -> (i32, i32) {
    %c0_i32 = arith.constant 0 : i32
    %c0_i32_0 = arith.constant 0 : i32
    %c0_i32_1 = arith.constant 0 : i32
    return %c0_i32, %c0_i32_0 : i32, i32
  }
  func.func @transform_14(%arg0: i32, %arg1: i32, %arg2: memref<32xi32, #tpu.memory_space<smem>>, %arg3: memref<2xi32, #tpu.memory_space<smem>>) -> (i32, i32) {
    %c0_i32 = arith.constant 0 : i32
    %c0_i32_0 = arith.constant 0 : i32
    %c0_i32_1 = arith.constant 0 : i32
    return %c0_i32, %c0_i32_0 : i32, i32
  }
  func.func @transform_15(%arg0: i32, %arg1: i32, %arg2: memref<32xi32, #tpu.memory_space<smem>>, %arg3: memref<2xi32, #tpu.memory_space<smem>>) -> (i32, i32, i32) {
    %c0_i32 = arith.constant 0 : i32
    %c0_i32_0 = arith.constant 0 : i32
    %c0_i32_1 = arith.constant 0 : i32
    return %arg0, %c0_i32, %c0_i32_0 : i32, i32, i32
  }
}

</mosaic_0001>

<llo_original>
// kernel: transformer_decoder.1
$region0: #{transformer_decoder.1}
  #allocation0 [shape = 'u32[]', space=smem, size = 0x4, offset = 0x4, fixed_abs, tag = 'smem constant byte address 0x4 - core index']
  #allocation1 [shape = 'u32[144,128]{1,0:T(1,128)}', space=vmem, size = 0x12000, scoped, tag = 'internal scratch']
  #allocation2 [shape = 'f32[8,32]{1,0:T(8,128)}', space=vmem, size = 0x1000, scoped, tag = 'scratch operand']
  #allocation3 [shape = 'f32[8,32]{1,0:T(8,128)}', space=vmem, size = 0x1000, scoped, tag = 'scratch operand']
  #allocation4 [shape = 's32[2]{0}', space=sflag, size = 0x8, scoped, tag = 'scratch operand']
  #allocation5 [shape = 's32[1]{0}', space=sflag, size = 0x4, scoped, tag = 'scoped memory for transformer_decoder.1']
  #allocation6 [shape = 'u8[512]{0}', space=smem, size = 0x200, scoped, tag = 'prefetched SMEM operand 0']
  #allocation7 [shape = 'u8[512]{0}', space=smem, size = 0x200, scoped, tag = 'prefetched SMEM operand 1']
  #allocation10 [shape = 's32[]', space=sflag, size = 0x4, offset = 0, fixed_abs, tag = 'sflag constant byte address 0x0 - dummy sync flag']
  #allocation11 [shape = 's32[]', space=sflag, size = 0x4, offset = 0, fixed_abs, tag = 'sflag constant byte address 0x0 - dummy sync flag']
  %s0 = inlined_call_operand.vmem [shape: s32[32], index: 0, kind: input, shape index: {}]
  %s1 = inlined_call_operand.vmem [shape: s32[2], index: 1, kind: input, shape index: {}]
  %s2 = inlined_call_operand.vmem [shape: f32[29,32], index: 2, kind: input, shape index: {}]
  %s3 = inlined_call_operand.vmem [shape: f32[2,32,96], index: 3, kind: input, shape index: {}]
  %s4 = inlined_call_operand.vmem [shape: f32[2,1,96], index: 4, kind: input, shape index: {}]
  %s5 = inlined_call_operand.vmem [shape: f32[2,32,32], index: 5, kind: input, shape index: {}]
  %s6 = inlined_call_operand.vmem [shape: f32[2,1,32], index: 6, kind: input, shape index: {}]
  %s7 = inlined_call_operand.vmem [shape: f32[2,1,32], index: 7, kind: input, shape index: {}]
  %s8 = inlined_call_operand.vmem [shape: f32[2,1,32], index: 8, kind: input, shape index: {}]
  %s9 = inlined_call_operand.vmem [shape: f32[2,32,96], index: 9, kind: input, shape index: {}]
  %s10 = inlined_call_operand.vmem [shape: f32[2,1,96], index: 10, kind: input, shape index: {}]
  %s11 = inlined_call_operand.vmem [shape: f32[2,96,32], index: 11, kind: input, shape index: {}]
  %s12 = inlined_call_operand.vmem [shape: f32[2,1,32], index: 12, kind: input, shape index: {}]
  %s13 = inlined_call_operand.vmem [shape: f32[2,1,32], index: 13, kind: input, shape index: {}]
  %s14 = inlined_call_operand.vmem [shape: f32[2,1,32], index: 14, kind: input, shape index: {}]
  %s15 = inlined_call_operand.vmem [shape: f32[32,128], index: 15, kind: input, shape index: {}]
  %s16 = inlined_call_operand.vmem [shape: f32[1,128], index: 16, kind: input, shape index: {}]
  %s17 = inlined_call_operand.hbm [shape: f32[2,1,128], index: 17, kind: output, shape index: {}]
  %s18 = sld [smem:[#allocation0]]
  $region164: #{transformer_decoder.1} parent=0
    _
  %s20 = ssub.s32 1, %s18
  %s21 = scalar_select 0, %s20, %s18
  %s22 = sshll.u32 %s0, 4
  %s23 = int_to_ptr.vmem [resolvable:$true] %s22
  %25 = dma.vmem_to_smem %s23, 16, [#allocation6], [#allocation5]
  %s26 = sshll.u32 %s1, 4
  %s27 = int_to_ptr.vmem [resolvable:$true] %s26
  %29 = dma.vmem_to_smem %s27, 16, [#allocation7], [#allocation5]
  %30 = dma.done [#allocation5], 32
  %31 = sfence
  $region1: #{transformer_decoder.1} parent=0
    #allocation8 [shape = 'u8[1024]{0}', space=vmem, size = 0x400, scoped, tag = 'output window, operand 0']
    #allocation9 [shape = 's32[2]{0}', space=sflag, size = 0x8, scoped, tag = 'scoped memory for transformer_decoder.1']
    %32 = vsyncpa [#allocation9], 0
    %s33 = scalar_lea.sflag [#allocation9], 1
    %34 = vsyncpa %s33, 0
    loop: start=0, step=1, limit=6
    $region2: #{transformer_decoder.1} parent=1 // loop_pre_header
      _
    $region3: #{transformer_decoder.1} parent=1 // loop_header
      %s36 = sphi 0, %s40
      %p37 = scmp.ge.s32.totalorder %s36, 6
      %s43 = sphi 0, %s55
      %s44 = sphi 0, %s51
      %s45 = sphi 0, %s43
      %s46 = sphi 0, %s44
      %s47 = sphi 0, %s45
      %s48 = sphi 0, %s46
      %s58 = sphi 0, %s60
      %s61 = sphi 0, %s58
      %s62 = sphi 0, %s61
      %s78 = sphi 0, %s62
      %s84 = sphi 0, %s86
      %s87 = sphi 0, %s84
      %s88 = sphi 0, %s87
      %s104 = sphi 0, %s88
      %s110 = sphi 0, %s112
      %s113 = sphi 0, %s110
      %s114 = sphi 0, %s113
      %s130 = sphi 0, %s114
      %s136 = sphi 0, %s138
      %s139 = sphi 0, %s136
      %s140 = sphi 0, %s139
      %s156 = sphi 0, %s140
      %s162 = sphi 0, %s164
      %s165 = sphi 0, %s162
      %s166 = sphi 0, %s165
      %s182 = sphi 0, %s166
      %s188 = sphi 0, %s190
      %s191 = sphi 0, %s188
      %s192 = sphi 0, %s191
      %s208 = sphi 0, %s192
      %s214 = sphi 0, %s216
      %s217 = sphi 0, %s214
      %s218 = sphi 0, %s217
      %s234 = sphi 0, %s218
      %s240 = sphi 0, %s242
      %s243 = sphi 0, %s240
      %s244 = sphi 0, %s243
      %s260 = sphi 0, %s244
      %s266 = sphi 0, %s268
      %s269 = sphi 0, %s266
      %s270 = sphi 0, %s269
      %s286 = sphi 0, %s270
      %s292 = sphi 0, %s294
      %s295 = sphi 0, %s292
      %s296 = sphi 0, %s295
      %s312 = sphi 0, %s296
      %s318 = sphi 0, %s320
      %s321 = sphi 0, %s318
      %s322 = sphi 0, %s321
      %s338 = sphi 0, %s322
      %s344 = sphi 0, %s346
      %s347 = sphi 0, %s344
      %s348 = sphi 0, %s347
      %s364 = sphi 0, %s348
      %s368 = sphi 0, %s368
      %s370 = sphi 0, %s368
      %s371 = sphi 0, %s370
      %s385 = sphi 0, %s371
      %s389 = sphi 0, %s389
      %s391 = sphi 0, %s389
      %s392 = sphi 0, %s391
      %s406 = sphi 0, %s392
      %s412 = sphi 0, %s414
      %s415 = sphi 0, %s412
      %s416 = sphi 0, %s415
      %s432 = sphi 0, %s416
    $region4: #{transformer_decoder.1} parent=1 // loop_header_branch
      %39 = sbr.rel (%p37) target = $region8
    $region5: #{transformer_decoder.1} parent=1 // loop_body
      %s41 = ssub.s32 %s36, 1
      %s42 = ssub.s32 %s36, 2
      %s49 = sadd.s32 1, %s44
      %p50 = scmp.ge.s32.totalorder %s49, 2
      %s51 = scalar_select %p50, 0, %s49
      %s52 = sadd.s32 1, %s43
      %s53 = scalar_select %p50, %s52, %s43
      %p54 = scmp.ge.s32.totalorder %s53, 2
      %s55 = scalar_select %p54, 0, %s53
      %s56 = ssub.s32 %s44, %s51
      %p57 = scmp.eq.s32.totalorder %s56, 0
      %s59 = sadd.s32 %s58, 1
      %s60 = scalar_select %p57, %s58, %s59
      %p63 = pneg %p57
      %p64 = scmp.eq.s32.totalorder %s36, 3
      %p65 = por %p63, %p64
      %p66 = scmp.ne.s32.totalorder %s58, %s61
      %p67 = scmp.eq.s32.totalorder %s36, 0
      %p68 = por %p66, %p67
      %p69 = scmp.ne.s32.totalorder %s58, %s61
      %p70 = scmp.eq.s32.totalorder %s41, 3
      %p71 = por %p69, %p70
      %p72 = scmp.ne.s32.totalorder %s61, %s62
      %p73 = scmp.eq.s32.totalorder %s41, 0
      %p74 = por %p72, %p73
      %p75 = scmp.ne.s32.totalorder %s61, %s62
      %p76 = scmp.eq.s32.totalorder %s42, 3
      %p77 = por %p75, %p76
      %p79 = scmp.ne.s32.totalorder %s62, %s78
      %p80 = scmp.eq.s32.totalorder %s42, 0
      %p81 = por %p79, %p80
      %s82 = ssub.s32 %s44, %s51
      %p83 = scmp.eq.s32.totalorder %s82, 0
      %s85 = sadd.s32 %s84, 1
      %s86 = scalar_select %p83, %s84, %s85
      %p89 = pneg %p83
      %p90 = scmp.eq.s32.totalorder %s36, 3
      %p91 = por %p89, %p90
      %p92 = scmp.ne.s32.totalorder %s84, %s87
      %p93 = scmp.eq.s32.totalorder %s36, 0
      %p94 = por %p92, %p93
      %p95 = scmp.ne.s32.totalorder %s84, %s87
      %p96 = scmp.eq.s32.totalorder %s41, 3
      %p97 = por %p95, %p96
      %p98 = scmp.ne.s32.totalorder %s87, %s88
      %p99 = scmp.eq.s32.totalorder %s41, 0
      %p100 = por %p98, %p99
      %p101 = scmp.ne.s32.totalorder %s87, %s88
      %p102 = scmp.eq.s32.totalorder %s42, 3
      %p103 = por %p101, %p102
      %p105 = scmp.ne.s32.totalorder %s88, %s104
      %p106 = scmp.eq.s32.totalorder %s42, 0
      %p107 = por %p105, %p106
      %s108 = ssub.s32 %s44, %s51
      %p109 = scmp.eq.s32.totalorder %s108, 0
      %s111 = sadd.s32 %s110, 1
      %s112 = scalar_select %p109, %s110, %s111
      %p115 = pneg %p109
      %p116 = scmp.eq.s32.totalorder %s36, 3
      %p117 = por %p115, %p116
      %p118 = scmp.ne.s32.totalorder %s110, %s113
      %p119 = scmp.eq.s32.totalorder %s36, 0
      %p120 = por %p118, %p119
      %p121 = scmp.ne.s32.totalorder %s110, %s113
      %p122 = scmp.eq.s32.totalorder %s41, 3
      %p123 = por %p121, %p122
      %p124 = scmp.ne.s32.totalorder %s113, %s114
      %p125 = scmp.eq.s32.totalorder %s41, 0
      %p126 = por %p124, %p125
      %p127 = scmp.ne.s32.totalorder %s113, %s114
      %p128 = scmp.eq.s32.totalorder %s42, 3
      %p129 = por %p127, %p128
      %p131 = scmp.ne.s32.totalorder %s114, %s130
      %p132 = scmp.eq.s32.totalorder %s42, 0
      %p133 = por %p131, %p132
      %s134 = ssub.s32 %s44, %s51
      %p135 = scmp.eq.s32.totalorder %s134, 0
      %s137 = sadd.s32 %s136, 1
      %s138 = scalar_select %p135, %s136, %s137
      %p141 = pneg %p135
      %p142 = scmp.eq.s32.totalorder %s36, 3
      %p143 = por %p141, %p142
      %p144 = scmp.ne.s32.totalorder %s136, %s139
      %p145 = scmp.eq.s32.totalorder %s36, 0
      %p146 = por %p144, %p145
      %p147 = scmp.ne.s32.totalorder %s136, %s139
      %p148 = scmp.eq.s32.totalorder %s41, 3
      %p149 = por %p147, %p148
      %p150 = scmp.ne.s32.totalorder %s139, %s140
      %p151 = scmp.eq.s32.totalorder %s41, 0
      %p152 = por %p150, %p151
      %p153 = scmp.ne.s32.totalorder %s139, %s140
      %p154 = scmp.eq.s32.totalorder %s42, 3
      %p155 = por %p153, %p154
      %p157 = scmp.ne.s32.totalorder %s140, %s156
      %p158 = scmp.eq.s32.totalorder %s42, 0
      %p159 = por %p157, %p158
      %s160 = ssub.s32 %s44, %s51
      %p161 = scmp.eq.s32.totalorder %s160, 0
      %s163 = sadd.s32 %s162, 1
      %s164 = scalar_select %p161, %s162, %s163
      %p167 = pneg %p161
      %p168 = scmp.eq.s32.totalorder %s36, 3
      %p169 = por %p167, %p168
      %p170 = scmp.ne.s32.totalorder %s162, %s165
      %p171 = scmp.eq.s32.totalorder %s36, 0
      %p172 = por %p170, %p171
      %p173 = scmp.ne.s32.totalorder %s162, %s165
      %p174 = scmp.eq.s32.totalorder %s41, 3
      %p175 = por %p173, %p174
      %p176 = scmp.ne.s32.totalorder %s165, %s166
      %p177 = scmp.eq.s32.totalorder %s41, 0
      %p178 = por %p176, %p177
      %p179 = scmp.ne.s32.totalorder %s165, %s166
      %p180 = scmp.eq.s32.totalorder %s42, 3
      %p181 = por %p179, %p180
      %p183 = scmp.ne.s32.totalorder %s166, %s182
      %p184 = scmp.eq.s32.totalorder %s42, 0
      %p185 = por %p183, %p184
      %s186 = ssub.s32 %s44, %s51
      %p187 = scmp.eq.s32.totalorder %s186, 0
      %s189 = sadd.s32 %s188, 1
      %s190 = scalar_select %p187, %s188, %s189
      %p193 = pneg %p187
      %p194 = scmp.eq.s32.totalorder %s36, 3
      %p195 = por %p193, %p194
      %p196 = scmp.ne.s32.totalorder %s188, %s191
      %p197 = scmp.eq.s32.totalorder %s36, 0
      %p198 = por %p196, %p197
      %p199 = scmp.ne.s32.totalorder %s188, %s191
      %p200 = scmp.eq.s32.totalorder %s41, 3
      %p201 = por %p199, %p200
      %p202 = scmp.ne.s32.totalorder %s191, %s192
      %p203 = scmp.eq.s32.totalorder %s41, 0
      %p204 = por %p202, %p203
      %p205 = scmp.ne.s32.totalorder %s191, %s192
      %p206 = scmp.eq.s32.totalorder %s42, 3
      %p207 = por %p205, %p206
      %p209 = scmp.ne.s32.totalorder %s192, %s208
      %p210 = scmp.eq.s32.totalorder %s42, 0
      %p211 = por %p209, %p210
      %s212 = ssub.s32 %s44, %s51
      %p213 = scmp.eq.s32.totalorder %s212, 0
      %s215 = sadd.s32 %s214, 1
      %s216 = scalar_select %p213, %s214, %s215
      %p219 = pneg %p213
      %p220 = scmp.eq.s32.totalorder %s36, 3
      %p221 = por %p219, %p220
      %p222 = scmp.ne.s32.totalorder %s214, %s217
      %p223 = scmp.eq.s32.totalorder %s36, 0
      %p224 = por %p222, %p223
      %p225 = scmp.ne.s32.totalorder %s214, %s217
      %p226 = scmp.eq.s32.totalorder %s41, 3
      %p227 = por %p225, %p226
      %p228 = scmp.ne.s32.totalorder %s217, %s218
      %p229 = scmp.eq.s32.totalorder %s41, 0
      %p230 = por %p228, %p229
      %p231 = scmp.ne.s32.totalorder %s217, %s218
      %p232 = scmp.eq.s32.totalorder %s42, 3
      %p233 = por %p231, %p232
      %p235 = scmp.ne.s32.totalorder %s218, %s234
      %p236 = scmp.eq.s32.totalorder %s42, 0
      %p237 = por %p235, %p236
      %s238 = ssub.s32 %s44, %s51
      %p239 = scmp.eq.s32.totalorder %s238, 0
      %s241 = sadd.s32 %s240, 1
      %s242 = scalar_select %p239, %s240, %s241
      %p245 = pneg %p239
      %p246 = scmp.eq.s32.totalorder %s36, 3
      %p247 = por %p245, %p246
      %p248 = scmp.ne.s32.totalorder %s240, %s243
      %p249 = scmp.eq.s32.totalorder %s36, 0
      %p250 = por %p248, %p249
      %p251 = scmp.ne.s32.totalorder %s240, %s243
      %p252 = scmp.eq.s32.totalorder %s41, 3
      %p253 = por %p251, %p252
      %p254 = scmp.ne.s32.totalorder %s243, %s244
      %p255 = scmp.eq.s32.totalorder %s41, 0
      %p256 = por %p254, %p255
      %p257 = scmp.ne.s32.totalorder %s243, %s244
      %p258 = scmp.eq.s32.totalorder %s42, 3
      %p259 = por %p257, %p258
      %p261 = scmp.ne.s32.totalorder %s244, %s260
      %p262 = scmp.eq.s32.totalorder %s42, 0
      %p263 = por %p261, %p262
      %s264 = ssub.s32 %s44, %s51
      %p265 = scmp.eq.s32.totalorder %s264, 0
      %s267 = sadd.s32 %s266, 1
      %s268 = scalar_select %p265, %s266, %s267
      %p271 = pneg %p265
      %p272 = scmp.eq.s32.totalorder %s36, 3
      %p273 = por %p271, %p272
      %p274 = scmp.ne.s32.totalorder %s266, %s269
      %p275 = scmp.eq.s32.totalorder %s36, 0
      %p276 = por %p274, %p275
      %p277 = scmp.ne.s32.totalorder %s266, %s269
      %p278 = scmp.eq.s32.totalorder %s41, 3
      %p279 = por %p277, %p278
      %p280 = scmp.ne.s32.totalorder %s269, %s270
      %p281 = scmp.eq.s32.totalorder %s41, 0
      %p282 = por %p280, %p281
      %p283 = scmp.ne.s32.totalorder %s269, %s270
      %p284 = scmp.eq.s32.totalorder %s42, 3
      %p285 = por %p283, %p284
      %p287 = scmp.ne.s32.totalorder %s270, %s286
      %p288 = scmp.eq.s32.totalorder %s42, 0
      %p289 = por %p287, %p288
      %s290 = ssub.s32 %s44, %s51
      %p291 = scmp.eq.s32.totalorder %s290, 0
      %s293 = sadd.s32 %s292, 1
      %s294 = scalar_select %p291, %s292, %s293
      %p297 = pneg %p291
      %p298 = scmp.eq.s32.totalorder %s36, 3
      %p299 = por %p297, %p298
      %p300 = scmp.ne.s32.totalorder %s292, %s295
      %p301 = scmp.eq.s32.totalorder %s36, 0
      %p302 = por %p300, %p301
      %p303 = scmp.ne.s32.totalorder %s292, %s295
      %p304 = scmp.eq.s32.totalorder %s41, 3
      %p305 = por %p303, %p304
      %p306 = scmp.ne.s32.totalorder %s295, %s296
      %p307 = scmp.eq.s32.totalorder %s41, 0
      %p308 = por %p306, %p307
      %p309 = scmp.ne.s32.totalorder %s295, %s296
      %p310 = scmp.eq.s32.totalorder %s42, 3
      %p311 = por %p309, %p310
      %p313 = scmp.ne.s32.totalorder %s296, %s312
      %p314 = scmp.eq.s32.totalorder %s42, 0
      %p315 = por %p313, %p314
      %s316 = ssub.s32 %s44, %s51
      %p317 = scmp.eq.s32.totalorder %s316, 0
      %s319 = sadd.s32 %s318, 1
      %s320 = scalar_select %p317, %s318, %s319
      %p323 = pneg %p317
      %p324 = scmp.eq.s32.totalorder %s36, 3
      %p325 = por %p323, %p324
      %p326 = scmp.ne.s32.totalorder %s318, %s321
      %p327 = scmp.eq.s32.totalorder %s36, 0
      %p328 = por %p326, %p327
      %p329 = scmp.ne.s32.totalorder %s318, %s321
      %p330 = scmp.eq.s32.totalorder %s41, 3
      %p331 = por %p329, %p330
      %p332 = scmp.ne.s32.totalorder %s321, %s322
      %p333 = scmp.eq.s32.totalorder %s41, 0
      %p334 = por %p332, %p333
      %p335 = scmp.ne.s32.totalorder %s321, %s322
      %p336 = scmp.eq.s32.totalorder %s42, 3
      %p337 = por %p335, %p336
      %p339 = scmp.ne.s32.totalorder %s322, %s338
      %p340 = scmp.eq.s32.totalorder %s42, 0
      %p341 = por %p339, %p340
      %s342 = ssub.s32 %s44, %s51
      %p343 = scmp.eq.s32.totalorder %s342, 0
      %s345 = sadd.s32 %s344, 1
      %s346 = scalar_select %p343, %s344, %s345
      %p349 = pneg %p343
      %p350 = scmp.eq.s32.totalorder %s36, 3
      %p351 = por %p349, %p350
      %p352 = scmp.ne.s32.totalorder %s344, %s347
      %p353 = scmp.eq.s32.totalorder %s36, 0
      %p354 = por %p352, %p353
      %p355 = scmp.ne.s32.totalorder %s344, %s347
      %p356 = scmp.eq.s32.totalorder %s41, 3
      %p357 = por %p355, %p356
      %p358 = scmp.ne.s32.totalorder %s347, %s348
      %p359 = scmp.eq.s32.totalorder %s41, 0
      %p360 = por %p358, %p359
      %p361 = scmp.ne.s32.totalorder %s347, %s348
      %p362 = scmp.eq.s32.totalorder %s42, 3
      %p363 = por %p361, %p362
      %p365 = scmp.ne.s32.totalorder %s348, %s364
      %p366 = scmp.eq.s32.totalorder %s42, 0
      %p367 = por %p365, %p366
      %s369 = sadd.s32 %s368, 1
      %p372 = scmp.eq.s32.totalorder %s36, 3
      %p373 = scmp.ne.s32.totalorder %s368, %s370
      %p374 = scmp.eq.s32.totalorder %s36, 0
      %p375 = por %p373, %p374
      %p376 = scmp.ne.s32.totalorder %s368, %s370
      %p377 = scmp.eq.s32.totalorder %s41, 3
      %p378 = por %p376, %p377
      %p379 = scmp.ne.s32.totalorder %s370, %s371
      %p380 = scmp.eq.s32.totalorder %s41, 0
      %p381 = por %p379, %p380
      %p382 = scmp.ne.s32.totalorder %s370, %s371
      %p383 = scmp.eq.s32.totalorder %s42, 3
      %p384 = por %p382, %p383
      %p386 = scmp.ne.s32.totalorder %s371, %s385
      %p387 = scmp.eq.s32.totalorder %s42, 0
      %p388 = por %p386, %p387
      %s390 = sadd.s32 %s389, 1
      %p393 = scmp.eq.s32.totalorder %s36, 3
      %p394 = scmp.ne.s32.totalorder %s389, %s391
      %p395 = scmp.eq.s32.totalorder %s36, 0
      %p396 = por %p394, %p395
      %p397 = scmp.ne.s32.totalorder %s389, %s391
      %p398 = scmp.eq.s32.totalorder %s41, 3
      %p399 = por %p397, %p398
      %p400 = scmp.ne.s32.totalorder %s391, %s392
      %p401 = scmp.eq.s32.totalorder %s41, 0
      %p402 = por %p400, %p401
      %p403 = scmp.ne.s32.totalorder %s391, %s392
      %p404 = scmp.eq.s32.totalorder %s42, 3
      %p405 = por %p403, %p404
      %p407 = scmp.ne.s32.totalorder %s392, %s406
      %p408 = scmp.eq.s32.totalorder %s42, 0
      %p409 = por %p407, %p408
      %s410 = ssub.s32 %s43, %s55
      %p411 = scmp.eq.s32.totalorder %s410, 0
      %s413 = sadd.s32 %s412, 1
      %s414 = scalar_select %p411, %s412, %s413
      %p417 = pneg %p411
      %p418 = scmp.eq.s32.totalorder %s36, 3
      %p419 = por %p417, %p418
      %p420 = scmp.ne.s32.totalorder %s412, %s415
      %p421 = scmp.eq.s32.totalorder %s36, 0
      %p422 = por %p420, %p421
      %p423 = scmp.ne.s32.totalorder %s412, %s415
      %p424 = scmp.eq.s32.totalorder %s41, 3
      %p425 = por %p423, %p424
      %p426 = scmp.ne.s32.totalorder %s415, %s416
      %p427 = scmp.eq.s32.totalorder %s41, 0
      %p428 = por %p426, %p427
      %p429 = scmp.ne.s32.totalorder %s415, %s416
      %p430 = scmp.eq.s32.totalorder %s42, 3
      %p431 = por %p429, %p430
      %p433 = scmp.ne.s32.totalorder %s416, %s432
      %p434 = scmp.eq.s32.totalorder %s42, 0
      %p435 = por %p433, %p434
      %p436 = scmp.le.s32.totalorder 1, %s36
      %p437 = scmp.lt.s32.totalorder %s36, 5
      %p438 = pnand %p436, %p437
      %p439 = pneg %p438
      // Predicated region
      $region9: #{transformer_decoder.1} parent=5 // pred_check
        _
      $region10: #{transformer_decoder.1} parent=5 // pred_check_branch
        %441 = sbr.rel (%p438) target = $region12
      $region11: #{transformer_decoder.1} parent=5 // pred_region
        %s442 = ssub.s32 %s36, 1
        // Predicated region
        $region13: #{transformer_decoder.1} parent=11 // pred_check
          %p443 = pneg %p381
        $region14: #{transformer_decoder.1} parent=11 // pred_check_branch
          %445 = sbr.rel (%p443) target = $region16
        $region15: #{transformer_decoder.1} parent=11 // pred_region
          _
        $region16: #{transformer_decoder.1} parent=11 // pred_fallthru
          _
        // Predicated region
        $region17: #{transformer_decoder.1} parent=11 // pred_check
          %p446 = pneg %p402
        $region18: #{transformer_decoder.1} parent=11 // pred_check_branch
          %448 = sbr.rel (%p446) target = $region20
        $region19: #{transformer_decoder.1} parent=11 // pred_region
          _
        $region20: #{transformer_decoder.1} parent=11 // pred_fallthru
          _
      $region12: #{transformer_decoder.1} parent=5 // pred_fallthru
        _
      %p449 = scmp.lt.s32.totalorder %s36, 4
      // Predicated region
      $region21: #{transformer_decoder.1} parent=5 // pred_check
        %p450 = pneg %p449
      $region22: #{transformer_decoder.1} parent=5 // pred_check_branch
        %452 = sbr.rel (%p450) target = $region24
      $region23: #{transformer_decoder.1} parent=5 // pred_region
        // Predicated region
        $region25: #{transformer_decoder.1} parent=23 // pred_check
          %p453 = pneg %p68
        $region26: #{transformer_decoder.1} parent=23 // pred_check_branch
          %455 = sbr.rel (%p453) target = $region28
        $region27: #{transformer_decoder.1} parent=23 // pred_region
          %p456 = scmp.lt.s32.totalorder %s44, 1
          %s457 = scalar_select %p456, %s44, 1
          %s458 = smul.addr %s457, 4
          %s459 = smul.addr %s458, 8
          %s460 = scalar_lea.vmem %s3, %s459
        $region28: #{transformer_decoder.1} parent=23 // pred_fallthru
          _
        // Predicated region
        $region29: #{transformer_decoder.1} parent=23 // pred_check
          %p461 = pneg %p94
        $region30: #{transformer_decoder.1} parent=23 // pred_check_branch
          %463 = sbr.rel (%p461) target = $region32
        $region31: #{transformer_decoder.1} parent=23 // pred_region
          %p464 = scmp.lt.s32.totalorder %s44, 1
          %s465 = scalar_select %p464, %s44, 1
          %s466 = scalar_lea.vmem %s4, %s465
        $region32: #{transformer_decoder.1} parent=23 // pred_fallthru
          _
        // Predicated region
        $region33: #{transformer_decoder.1} parent=23 // pred_check
          %p467 = pneg %p120
        $region34: #{transformer_decoder.1} parent=23 // pred_check_branch
          %469 = sbr.rel (%p467) target = $region36
        $region35: #{transformer_decoder.1} parent=23 // pred_region
          %p470 = scmp.lt.s32.totalorder %s44, 1
          %s471 = scalar_select %p470, %s44, 1
          %s472 = smul.addr %s471, 4
          %s473 = smul.addr %s472, 8
          %s474 = scalar_lea.vmem %s5, %s473
        $region36: #{transformer_decoder.1} parent=23 // pred_fallthru
          _
        // Predicated region
        $region37: #{transformer_decoder.1} parent=23 // pred_check
          %p475 = pneg %p146
        $region38: #{transformer_decoder.1} parent=23 // pred_check_branch
          %477 = sbr.rel (%p475) target = $region40
        $region39: #{transformer_decoder.1} parent=23 // pred_region
          %p478 = scmp.lt.s32.totalorder %s44, 1
          %s479 = scalar_select %p478, %s44, 1
          %s480 = scalar_lea.vmem %s6, %s479
        $region40: #{transformer_decoder.1} parent=23 // pred_fallthru
          _
        // Predicated region
        $region41: #{transformer_decoder.1} parent=23 // pred_check
          %p481 = pneg %p172
        $region42: #{transformer_decoder.1} parent=23 // pred_check_branch
          %483 = sbr.rel (%p481) target = $region44
        $region43: #{transformer_decoder.1} parent=23 // pred_region
          %p484 = scmp.lt.s32.totalorder %s44, 1
          %s485 = scalar_select %p484, %s44, 1
          %s486 = scalar_lea.vmem %s7, %s485
        $region44: #{transformer_decoder.1} parent=23 // pred_fallthru
          _
        // Predicated region
        $region45: #{transformer_decoder.1} parent=23 // pred_check
          %p487 = pneg %p198
        $region46: #{transformer_decoder.1} parent=23 // pred_check_branch
          %489 = sbr.rel (%p487) target = $region48
        $region47: #{transformer_decoder.1} parent=23 // pred_region
          %p490 = scmp.lt.s32.totalorder %s44, 1
          %s491 = scalar_select %p490, %s44, 1
          %s492 = scalar_lea.vmem %s8, %s491
        $region48: #{transformer_decoder.1} parent=23 // pred_fallthru
          _
        // Predicated region
        $region49: #{transformer_decoder.1} parent=23 // pred_check
          %p493 = pneg %p224
        $region50: #{transformer_decoder.1} parent=23 // pred_check_branch
          %495 = sbr.rel (%p493) target = $region52
        $region51: #{transformer_decoder.1} parent=23 // pred_region
          %p496 = scmp.lt.s32.totalorder %s44, 1
          %s497 = scalar_select %p496, %s44, 1
          %s498 = smul.addr %s497, 4
          %s499 = smul.addr %s498, 8
          %s500 = scalar_lea.vmem %s9, %s499
        $region52: #{transformer_decoder.1} parent=23 // pred_fallthru
          _
        // Predicated region
        $region53: #{transformer_decoder.1} parent=23 // pred_check
          %p501 = pneg %p250
        $region54: #{transformer_decoder.1} parent=23 // pred_check_branch
          %503 = sbr.rel (%p501) target = $region56
        $region55: #{transformer_decoder.1} parent=23 // pred_region
          %p504 = scmp.lt.s32.totalorder %s44, 1
          %s505 = scalar_select %p504, %s44, 1
          %s506 = scalar_lea.vmem %s10, %s505
        $region56: #{transformer_decoder.1} parent=23 // pred_fallthru
          _
        // Predicated region
        $region57: #{transformer_decoder.1} parent=23 // pred_check
          %p507 = pneg %p276
        $region58: #{transformer_decoder.1} parent=23 // pred_check_branch
          %509 = sbr.rel (%p507) target = $region60
        $region59: #{transformer_decoder.1} parent=23 // pred_region
          %p510 = scmp.lt.s32.totalorder %s44, 1
          %s511 = scalar_select %p510, %s44, 1
          %s512 = smul.addr %s511, 12
          %s513 = smul.addr %s512, 8
          %s514 = scalar_lea.vmem %s11, %s513
        $region60: #{transformer_decoder.1} parent=23 // pred_fallthru
          _
        // Predicated region
        $region61: #{transformer_decoder.1} parent=23 // pred_check
          %p515 = pneg %p302
        $region62: #{transformer_decoder.1} parent=23 // pred_check_branch
          %517 = sbr.rel (%p515) target = $region64
        $region63: #{transformer_decoder.1} parent=23 // pred_region
          %p518 = scmp.lt.s32.totalorder %s44, 1
          %s519 = scalar_select %p518, %s44, 1
          %s520 = scalar_lea.vmem %s12, %s519
        $region64: #{transformer_decoder.1} parent=23 // pred_fallthru
          _
        // Predicated region
        $region65: #{transformer_decoder.1} parent=23 // pred_check
          %p521 = pneg %p328
        $region66: #{transformer_decoder.1} parent=23 // pred_check_branch
          %523 = sbr.rel (%p521) target = $region68
        $region67: #{transformer_decoder.1} parent=23 // pred_region
          %p524 = scmp.lt.s32.totalorder %s44, 1
          %s525 = scalar_select %p524, %s44, 1
          %s526 = scalar_lea.vmem %s13, %s525
        $region68: #{transformer_decoder.1} parent=23 // pred_fallthru
          _
        // Predicated region
        $region69: #{transformer_decoder.1} parent=23 // pred_check
          %p527 = pneg %p354
        $region70: #{transformer_decoder.1} parent=23 // pred_check_branch
          %529 = sbr.rel (%p527) target = $region72
        $region71: #{transformer_decoder.1} parent=23 // pred_region
          %p530 = scmp.lt.s32.totalorder %s44, 1
          %s531 = scalar_select %p530, %s44, 1
          %s532 = scalar_lea.vmem %s14, %s531
        $region72: #{transformer_decoder.1} parent=23 // pred_fallthru
          _
      $region24: #{transformer_decoder.1} parent=5 // pred_fallthru
        _
      %p533 = scmp.le.s32.totalorder 1, %s36
      %p534 = scmp.lt.s32.totalorder %s36, 5
      %p535 = pnand %p533, %p534
      %p536 = pneg %p535
      // Predicated region
      $region73: #{transformer_decoder.1} parent=5 // pred_check
        _
      $region74: #{transformer_decoder.1} parent=5 // pred_check_branch
        %538 = sbr.rel (%p535) target = $region76
      $region75: #{transformer_decoder.1} parent=5 // pred_region
        %s539 = ssub.s32 %s36, 1
        %p540 = scmp.lt.s32.totalorder %s46, 1
        %s541 = scalar_select %p540, %s46, 1
        %s542 = smul.addr %s541, 4
        %s543 = smul.addr %s542, 8
        %s544 = scalar_lea.vmem %s3, %s543
        %p545 = pneg %p74
        %p546 = pneg %p71
        %p547 = scmp.lt.s32.totalorder %s46, 1
        %s548 = scalar_select %p547, %s46, 1
        %s549 = scalar_lea.vmem %s4, %s548
        %p550 = pneg %p100
        %p551 = pneg %p97
        %p552 = scmp.lt.s32.totalorder %s46, 1
        %s553 = scalar_select %p552, %s46, 1
        %s554 = smul.addr %s553, 4
        %s555 = smul.addr %s554, 8
        %s556 = scalar_lea.vmem %s5, %s555
        %p557 = pneg %p126
        %p558 = pneg %p123
        %p559 = scmp.lt.s32.totalorder %s46, 1
        %s560 = scalar_select %p559, %s46, 1
        %s561 = scalar_lea.vmem %s6, %s560
        %p562 = pneg %p152
        %p563 = pneg %p149
        %p564 = scmp.lt.s32.totalorder %s46, 1
        %s565 = scalar_select %p564, %s46, 1
        %s566 = scalar_lea.vmem %s7, %s565
        %p567 = pneg %p178
        %p568 = pneg %p175
        %p569 = scmp.lt.s32.totalorder %s46, 1
        %s570 = scalar_select %p569, %s46, 1
        %s571 = scalar_lea.vmem %s8, %s570
        %p572 = pneg %p204
        %p573 = pneg %p201
        %p574 = scmp.lt.s32.totalorder %s46, 1
        %s575 = scalar_select %p574, %s46, 1
        %s576 = smul.addr %s575, 4
        %s577 = smul.addr %s576, 8
        %s578 = scalar_lea.vmem %s9, %s577
        %p579 = pneg %p230
        %p580 = pneg %p227
        %p581 = scmp.lt.s32.totalorder %s46, 1
        %s582 = scalar_select %p581, %s46, 1
        %s583 = scalar_lea.vmem %s10, %s582
        %p584 = pneg %p256
        %p585 = pneg %p253
        %p586 = scmp.lt.s32.totalorder %s46, 1
        %s587 = scalar_select %p586, %s46, 1
        %s588 = smul.addr %s587, 12
        %s589 = smul.addr %s588, 8
        %s590 = scalar_lea.vmem %s11, %s589
        %p591 = pneg %p282
        %p592 = pneg %p279
        %p593 = scmp.lt.s32.totalorder %s46, 1
        %s594 = scalar_select %p593, %s46, 1
        %s595 = scalar_lea.vmem %s12, %s594
        %p596 = pneg %p308
        %p597 = pneg %p305
        %p598 = scmp.lt.s32.totalorder %s46, 1
        %s599 = scalar_select %p598, %s46, 1
        %s600 = scalar_lea.vmem %s13, %s599
        %p601 = pneg %p334
        %p602 = pneg %p331
        %p603 = scmp.lt.s32.totalorder %s46, 1
        %s604 = scalar_select %p603, %s46, 1
        %s605 = scalar_lea.vmem %s14, %s604
        %p606 = pneg %p360
        %p607 = pneg %p357
        %p608 = pneg %p381
        %p609 = pneg %p378
        %p610 = pneg %p402
        %p611 = pneg %p399
        %p612 = pneg %p428
        %p613 = pneg %p425
        %s614 = sand.u32 %s415, 1
        %s615 = scalar_lea.sflag [#allocation9], %s614
        %s616 = sand.u32 %s415, 1
        %s617 = scalar_lea.vmem [#allocation8], %s616
        %p618 = scmp.lt.s32.totalorder %s46, 1
        %s619 = scalar_select %p618, %s46, 1
        %s620 = smul.addr %s619, 4
        %s621 = smul.addr %s620, 8
        %s622 = scalar_lea.vmem %s3, %s621
        %p623 = scmp.lt.s32.totalorder %s46, 1
        %s624 = scalar_select %p623, %s46, 1
        %s625 = scalar_lea.vmem %s4, %s624
        %p626 = scmp.lt.s32.totalorder %s46, 1
        %s627 = scalar_select %p626, %s46, 1
        %s628 = smul.addr %s627, 4
        %s629 = smul.addr %s628, 8
        %s630 = scalar_lea.vmem %s5, %s629
        %p631 = scmp.lt.s32.totalorder %s46, 1
        %s632 = scalar_select %p631, %s46, 1
        %s633 = scalar_lea.vmem %s6, %s632
        %p634 = scmp.lt.s32.totalorder %s46, 1
        %s635 = scalar_select %p634, %s46, 1
        %s636 = scalar_lea.vmem %s7, %s635
        %p637 = scmp.lt.s32.totalorder %s46, 1
        %s638 = scalar_select %p637, %s46, 1
        %s639 = scalar_lea.vmem %s8, %s638
        %p640 = scmp.lt.s32.totalorder %s46, 1
        %s641 = scalar_select %p640, %s46, 1
        %s642 = smul.addr %s641, 4
        %s643 = smul.addr %s642, 8
        %s644 = scalar_lea.vmem %s9, %s643
        %p645 = scmp.lt.s32.totalorder %s46, 1
        %s646 = scalar_select %p645, %s46, 1
        %s647 = scalar_lea.vmem %s10, %s646
        %p648 = scmp.lt.s32.totalorder %s46, 1
        %s649 = scalar_select %p648, %s46, 1
        %s650 = smul.addr %s649, 12
        %s651 = smul.addr %s650, 8
        %s652 = scalar_lea.vmem %s11, %s651
        %p653 = scmp.lt.s32.totalorder %s46, 1
        %s654 = scalar_select %p653, %s46, 1
        %s655 = scalar_lea.vmem %s12, %s654
        %p656 = scmp.lt.s32.totalorder %s46, 1
        %s657 = scalar_select %p656, %s46, 1
        %s658 = scalar_lea.vmem %s13, %s657
        %p659 = scmp.lt.s32.totalorder %s46, 1
        %s660 = scalar_select %p659, %s46, 1
        %s661 = scalar_lea.vmem %s14, %s660
        %p662 = scmp.eq.s32.totalorder %s46, 0
        // Predicated region
        $region77: #{transformer_decoder.1} parent=75 // pred_check
          %p663 = pneg %p662
        $region78: #{transformer_decoder.1} parent=75 // pred_check_branch
          %665 = sbr.rel (%p663) target = $region80
        $region79: #{transformer_decoder.1} parent=75 // pred_region
          loop: start=0, step=1, limit=8
          $region81: #{transformer_decoder.1} parent=79 // loop_pre_header
            _
          $region82: #{transformer_decoder.1} parent=79 // loop_header
            %s667 = sphi 0, %s671
            %p668 = scmp.ge.s32.totalorder %s667, 8
          $region83: #{transformer_decoder.1} parent=79 // loop_header_branch
            %670 = sbr.rel (%p668) target = $region87
          $region84: #{transformer_decoder.1} parent=79 // loop_body
            %s672 = smul.u32 %s45, 8
            %s673 = sadd.s32 %s672, %s667
            %s674 = smul.u32 %s673, 2
            %s675 = sld [smem:[#allocation6 + %s674]]
            %s676 = sadd.s32 %s674, 1
            %s677 = sld [smem:[#allocation6 + %s676]]
            %s678 = scalar_lea.vmem %s2, %s675
            %s679 = scalar_lea.vmem [#allocation2], %s667
            %p681 = scmp.lt.u32.totalorder 1, 8
            %p682 = pneg %p681
            // Predicated region
            $region88: #{transformer_decoder.1} parent=84 // pred_check
              _
            $region89: #{transformer_decoder.1} parent=84 // pred_check_branch
              %684 = sbr.rel (%p681) target = $region91
            $region90: #{transformer_decoder.1} parent=84 // pred_region
              %s699 = sand.u32 1, 7
              %p700 = scmp.eq.s32.totalorder %s699, 0
              %p701 = pneg %p700
              // Predicated region
              $region103: #{transformer_decoder.1} parent=90 // pred_check
                _
              $region104: #{transformer_decoder.1} parent=90 // pred_check_branch
                %703 = sbr.rel (%p700) target = $region106
              $region105: #{transformer_decoder.1} parent=90 // pred_region
                %s704 = sand.u32 1, 7
                %s705 = ssub.s32 1, %s704
                %s706 = scalar_lea.vmem %s678, %s705
                %s707 = ssub.s32 1, %s704
                %s708 = scalar_lea.vmem %s679, %s707 [#allocation2]
                %s709 = sshllo.u32 0, %s704
                loop: start=0, step=1, limit=1
                $region107: #{transformer_decoder.1} parent=105 // loop_pre_header
                  _
                $region108: #{transformer_decoder.1} parent=105 // loop_header
                  %s711 = sphi 0, %s715
                  %p712 = scmp.ge.s32.totalorder %s711, 1
                  %s716 = sphi %s706, %s706
                  %s717 = sphi %s708, %s708
                $region109: #{transformer_decoder.1} parent=105 // loop_header_branch
                  %714 = sbr.rel (%p712) target = $region113
                $region110: #{transformer_decoder.1} parent=105 // loop_body
                  %v718 = vld [vmem:[%s716] sm:%s709]
                  %719 = vst [vmem:[%s717] sm:%s709] %v718
                $region111: #{transformer_decoder.1} parent=105 // loop_footer
                  %s715 = sadd.s32 1, %s711
                $region112: #{transformer_decoder.1} parent=105 // loop_footer_branch
                  %710 = sbr.rel target = $region108
                $region113: #{transformer_decoder.1} parent=105 // loop_exit
                  _
              $region106: #{transformer_decoder.1} parent=90 // pred_fallthru
                _
            $region91: #{transformer_decoder.1} parent=84 // pred_fallthru
              _
            // Predicated region
            $region92: #{transformer_decoder.1} parent=84 // pred_check
              %p685 = pneg %p681
            $region93: #{transformer_decoder.1} parent=84 // pred_check_branch
              %687 = sbr.rel (%p685) target = $region95
            $region94: #{transformer_decoder.1} parent=84 // pred_region
              %s688 = sshllo.u32 0, 1
              loop: start=0, step=1, limit=1
              $region96: #{transformer_decoder.1} parent=94 // loop_pre_header
                _
              $region97: #{transformer_decoder.1} parent=94 // loop_header
                %s690 = sphi 0, %s694
                %p691 = scmp.ge.s32.totalorder %s690, 1
                %s695 = sphi %s678, %s678
                %s696 = sphi %s679, %s679
              $region98: #{transformer_decoder.1} parent=94 // loop_header_branch
                %693 = sbr.rel (%p691) target = $region102
              $region99: #{transformer_decoder.1} parent=94 // loop_body
                %v697 = vld [vmem:[%s695] sm:%s688]
                %698 = vst [vmem:[%s696] sm:%s688] %v697
              $region100: #{transformer_decoder.1} parent=94 // loop_footer
                %s694 = sadd.s32 1, %s690
              $region101: #{transformer_decoder.1} parent=94 // loop_footer_branch
                %689 = sbr.rel target = $region97
              $region102: #{transformer_decoder.1} parent=94 // loop_exit
                _
            $region95: #{transformer_decoder.1} parent=84 // pred_fallthru
              _
            // Predicated region
            $region114: #{transformer_decoder.1} parent=84 // pred_check
              _
            $region115: #{transformer_decoder.1} parent=84 // pred_check_branch
              %722 = sbr.rel (0) target = $region117
            $region116: #{transformer_decoder.1} parent=84 // pred_region
              %723 = vsyncadd [#allocation4], 16
            $region117: #{transformer_decoder.1} parent=84 // pred_fallthru
              _
            %s724 = scalar_lea.vmem %s2, %s677
            %s725 = scalar_lea.vmem [#allocation3], %s667
            %s726 = scalar_lea.sflag [#allocation4], 1
            %p728 = scmp.lt.u32.totalorder 1, 8
            %p729 = pneg %p728
            // Predicated region
            $region118: #{transformer_decoder.1} parent=84 // pred_check
              _
            $region119: #{transformer_decoder.1} parent=84 // pred_check_branch
              %731 = sbr.rel (%p728) target = $region121
            $region120: #{transformer_decoder.1} parent=84 // pred_region
              %s746 = sand.u32 1, 7
              %p747 = scmp.eq.s32.totalorder %s746, 0
              %p748 = pneg %p747
              // Predicated region
              $region133: #{transformer_decoder.1} parent=120 // pred_check
                _
              $region134: #{transformer_decoder.1} parent=120 // pred_check_branch
                %750 = sbr.rel (%p747) target = $region136
              $region135: #{transformer_decoder.1} parent=120 // pred_region
                %s751 = sand.u32 1, 7
                %s752 = ssub.s32 1, %s751
                %s753 = scalar_lea.vmem %s724, %s752
                %s754 = ssub.s32 1, %s751
                %s755 = scalar_lea.vmem %s725, %s754 [#allocation3]
                %s756 = sshllo.u32 0, %s751
                loop: start=0, step=1, limit=1
                $region137: #{transformer_decoder.1} parent=135 // loop_pre_header
                  _
                $region138: #{transformer_decoder.1} parent=135 // loop_header
                  %s758 = sphi 0, %s762
                  %p759 = scmp.ge.s32.totalorder %s758, 1
                  %s763 = sphi %s753, %s753
                  %s764 = sphi %s755, %s755
                $region139: #{transformer_decoder.1} parent=135 // loop_header_branch
                  %761 = sbr.rel (%p759) target = $region143
                $region140: #{transformer_decoder.1} parent=135 // loop_body
                  %v765 = vld [vmem:[%s763] sm:%s756]
                  %766 = vst [vmem:[%s764] sm:%s756] %v765
                $region141: #{transformer_decoder.1} parent=135 // loop_footer
                  %s762 = sadd.s32 1, %s758
                $region142: #{transformer_decoder.1} parent=135 // loop_footer_branch
                  %757 = sbr.rel target = $region138
                $region143: #{transformer_decoder.1} parent=135 // loop_exit
                  _
              $region136: #{transformer_decoder.1} parent=120 // pred_fallthru
                _
            $region121: #{transformer_decoder.1} parent=84 // pred_fallthru
              _
            // Predicated region
            $region122: #{transformer_decoder.1} parent=84 // pred_check
              %p732 = pneg %p728
            $region123: #{transformer_decoder.1} parent=84 // pred_check_branch
              %734 = sbr.rel (%p732) target = $region125
            $region124: #{transformer_decoder.1} parent=84 // pred_region
              %s735 = sshllo.u32 0, 1
              loop: start=0, step=1, limit=1
              $region126: #{transformer_decoder.1} parent=124 // loop_pre_header
                _
              $region127: #{transformer_decoder.1} parent=124 // loop_header
                %s737 = sphi 0, %s741
                %p738 = scmp.ge.s32.totalorder %s737, 1
                %s742 = sphi %s724, %s724
                %s743 = sphi %s725, %s725
              $region128: #{transformer_decoder.1} parent=124 // loop_header_branch
                %740 = sbr.rel (%p738) target = $region132
              $region129: #{transformer_decoder.1} parent=124 // loop_body
                %v744 = vld [vmem:[%s742] sm:%s735]
                %745 = vst [vmem:[%s743] sm:%s735] %v744
              $region130: #{transformer_decoder.1} parent=124 // loop_footer
                %s741 = sadd.s32 1, %s737
              $region131: #{transformer_decoder.1} parent=124 // loop_footer_branch
                %736 = sbr.rel target = $region127
              $region132: #{transformer_decoder.1} parent=124 // loop_exit
                _
            $region125: #{transformer_decoder.1} parent=84 // pred_fallthru
              _
            // Predicated region
            $region144: #{transformer_decoder.1} parent=84 // pred_check
              _
            $region145: #{transformer_decoder.1} parent=84 // pred_check_branch
              %769 = sbr.rel (0) target = $region147
            $region146: #{transformer_decoder.1} parent=84 // pred_region
              %770 = vsyncadd %s726, 16
            $region147: #{transformer_decoder.1} parent=84 // pred_fallthru
              _
            %s771 = smul.u32 1, 1
            %s772 = sshll.u32 %s771, 4
            %773 = dma.done [#allocation4], %s772
            %s774 = sshll.u32 %s771, 4
            %775 = dma.done %s726, %s774
          $region85: #{transformer_decoder.1} parent=79 // loop_footer
            %s671 = sadd.s32 1, %s667
          $region86: #{transformer_decoder.1} parent=79 // loop_footer_branch
            %666 = sbr.rel target = $region82
          $region87: #{transformer_decoder.1} parent=79 // loop_exit
            _
          %v776 = vld [vmem:[#allocation2] sm:$0xff]
          %v777 = vld [vmem:[#allocation3] sm:$0xff]
          %v778 = vadd.f32 %v776, %v777
          %vm779 = vcmask 261120
          %780 = vst.msk [vmem:[#allocation2] sm:$0xff] %vm779, %v778
        $region80: #{transformer_decoder.1} parent=75 // pred_fallthru
          _
        %v781 = vld [vmem:[#allocation2] sm:$0xff]
        %v782 = vlaneseq
        %v783 = vshrl.u32 %v782, 7
        %v784 = vlaneseq
        %v785 = vand.u32 %v784, 127
        %vm786 = vcmp.le.s32.totalorder %v785, %v783
        %v787 = vsel %vm786, 1, 0
        %v788 = vcvt.s32.f32 %v787
        %v789 = vld [vmem:[%s622] sm:$0xff]
        %v790 = vld [vmem:[%s622 + $0x8] sm:$0xff]
        %v791 = vld [vmem:[%s622 + $0x10] sm:$0xff]
        %v792 = vld [vmem:[%s622 + $0x18] sm:$0xff]
        %v793 = vld [vmem:[%s625] sm:$0x1]
        %v795 = vlaneseq
        %v796 = vshrl.u32 %v795, 7
        %v797 = vsub.s32 0, %v796
        %v798 = vrot.slane %v793, %v797
        %vm800 = vcmask 261120
        %v802 = vsel %vm800, %v781, 0
        %804 = vmatprep.subr.mxu0 0.0
        %805 = vmatpush1.msra.mxu0 %v789
        %806 = vmatprep.subr.mxu0 0.0
        %807 = vmatpush1.msra.mxu0 %v790
        %808 = vmatprep.subr.mxu0 0.0
        %809 = vmatpush1.msra.mxu0 %v791
        %810 = vmatprep.subr.mxu0 0.0
        %811 = vmatpush1.msra.mxu0 %v792
        %812 = vmatprep.subr.mxu0 0.0
        %813 = vmatpush1.msra.mxu0 0.0
        %814 = vmatprep.subr.mxu0 0.0
        %815 = vmatpush1.msra.mxu0 0.0
        %816 = vmatprep.subr.mxu0 0.0
        %817 = vmatpush1.msra.mxu0 0.0
        %818 = vmatprep.subr.mxu0 0.0
        %819 = vmatpush1.msra.mxu0 0.0
        %820 = vmatprep.subr.mxu0 0.0
        %821 = vmatpush1.msra.mxu0 0.0
        %822 = vmatprep.subr.mxu0 0.0
        %823 = vmatpush1.msra.mxu0 0.0
        %824 = vmatprep.subr.mxu0 0.0
        %825 = vmatpush1.msra.mxu0 0.0
        %826 = vmatprep.subr.mxu0 0.0
        %827 = vmatpush1.msra.mxu0 0.0
        %828 = vmatprep.subr.mxu0 0.0
        %829 = vmatpush1.msra.mxu0 0.0
        %830 = vmatprep.subr.mxu0 0.0
        %831 = vmatpush1.msra.mxu0 0.0
        %832 = vmatprep.subr.mxu0 0.0
        %833 = vmatpush1.msra.mxu0 0.0
        %834 = vmatprep.subr.mxu0 0.0
        %835 = vmatpush1.msra.mxu0 0.0
        %836 = vmatprep.subr.mxu0 0.0
        %837 = vmatpush1.msra.mxu0 0.0
        %838 = vmatprep.subr.mxu0 0.0
        %839 = vmatpush1.msra.mxu0 0.0
        %840 = vmatprep.subr.mxu0 0.0
        %841 = vmatpush1.msra.mxu0 0.0
        %842 = vmatprep.subr.mxu0 0.0
        %843 = vmatpush1.msra.mxu0 0.0
        %844 = vmatprep.subr.mxu0 0.0
        %845 = vmatpush1.msra.mxu0 0.0
        %846 = vmatprep.subr.mxu0 0.0
        %847 = vmatpush1.msra.mxu0 0.0
        %848 = vmatprep.subr.mxu0 0.0
        %849 = vmatpush1.msra.mxu0 0.0
        %850 = vmatprep.subr.mxu0 0.0
        %851 = vmatpush1.msra.mxu0 0.0
        %852 = vmatprep.subr.mxu0 0.0
        %853 = vmatpush1.msra.mxu0 0.0
        %854 = vmatprep.subr.mxu0 0.0
        %855 = vmatpush1.msra.mxu0 0.0
        %856 = vmatprep.subr.mxu0 0.0
        %857 = vmatpush1.msra.mxu0 0.0
        %858 = vmatprep.subr.mxu0 0.0
        %859 = vmatpush1.msra.mxu0 0.0
        %860 = vmatprep.subr.mxu0 0.0
        %861 = vmatpush1.msra.mxu0 0.0
        %862 = vmatprep.subr.mxu0 0.0
        %863 = vmatpush1.msra.mxu0 0.0
        %864 = vmatprep.subr.mxu0 0.0
        %865 = vmatpush1.msra.mxu0 0.0
        %866 = vmatprep.subr.mxu0 0.0
        %867 = vmatpush1.msra.mxu0 0.0
        %868 = vmatprep.mubr.f32.mxu0 0.0
        %869 = vmatmul.mubr.f32.gmra.mrb[0].mxu0 %v802
        %v870 = vpop.f32.mrb[0].mxu0
        %v871 = vadd.f32 %v798, %v870
        %v872 = vpop.f32.mrb[0].mxu0
        %873 = vdwg.mxu0
        %v874 = vld [vmem:[%s630] sm:$0xff]
        %v875 = vld [vmem:[%s630 + $0x8] sm:$0xff]
        %v876 = vld [vmem:[%s630 + $0x10] sm:$0xff]
        %v877 = vld [vmem:[%s630 + $0x18] sm:$0xff]
        %879 = vrot.lane.b32.xlu0 %v871, 96
        %v880 = vpop.permute.xlu0 %879
        %vm881 = vcmask 64512
        %v882 = vsel %vm881, %v871, 0
        %v884 = vsel %vm881, %v880, 0
        %886 = vmatprep.subr.mxu0 0.0
        %887 = vmatpush1.xpose.msra.mxu0 %v884
        %888 = vmatprep.subr.mxu0 0.0
        %889 = vmatpush1.xpose.msra.mxu0 0.0
        %890 = vmatprep.subr.mxu0 0.0
        %891 = vmatpush1.xpose.msra.mxu0 0.0
        %892 = vmatprep.subr.mxu0 0.0
        %893 = vmatpush1.xpose.msra.mxu0 0.0
        %894 = vmatprep.subr.mxu0 0.0
        %895 = vmatpush1.xpose.msra.mxu0 0.0
        %896 = vmatprep.subr.mxu0 0.0
        %897 = vmatpush1.xpose.msra.mxu0 0.0
        %898 = vmatprep.subr.mxu0 0.0
        %899 = vmatpush1.xpose.msra.mxu0 0.0
        %900 = vmatprep.subr.mxu0 0.0
        %901 = vmatpush1.xpose.msra.mxu0 0.0
        %902 = vmatprep.subr.mxu0 0.0
        %903 = vmatpush1.xpose.msra.mxu0 0.0
        %904 = vmatprep.subr.mxu0 0.0
        %905 = vmatpush1.xpose.msra.mxu0 0.0
        %906 = vmatprep.subr.mxu0 0.0
        %907 = vmatpush1.xpose.msra.mxu0 0.0
        %908 = vmatprep.subr.mxu0 0.0
        %909 = vmatpush1.xpose.msra.mxu0 0.0
        %910 = vmatprep.subr.mxu0 0.0
        %911 = vmatpush1.xpose.msra.mxu0 0.0
        %912 = vmatprep.subr.mxu0 0.0
        %913 = vmatpush1.xpose.msra.mxu0 0.0
        %914 = vmatprep.subr.mxu0 0.0
        %915 = vmatpush1.xpose.msra.mxu0 0.0
        %916 = vmatprep.subr.mxu0 0.0
        %917 = vmatpush1.xpose.msra.mxu0 0.0
        %918 = vmatprep.subr.mxu0 0.0
        %919 = vmatpush1.xpose.msra.mxu0 0.0
        %920 = vmatprep.subr.mxu0 0.0
        %921 = vmatpush1.xpose.msra.mxu0 0.0
        %922 = vmatprep.subr.mxu0 0.0
        %923 = vmatpush1.xpose.msra.mxu0 0.0
        %924 = vmatprep.subr.mxu0 0.0
        %925 = vmatpush1.xpose.msra.mxu0 0.0
        %926 = vmatprep.subr.mxu0 0.0
        %927 = vmatpush1.xpose.msra.mxu0 0.0
        %928 = vmatprep.subr.mxu0 0.0
        %929 = vmatpush1.xpose.msra.mxu0 0.0
        %930 = vmatprep.subr.mxu0 0.0
        %931 = vmatpush1.xpose.msra.mxu0 0.0
        %932 = vmatprep.subr.mxu0 0.0
        %933 = vmatpush1.xpose.msra.mxu0 0.0
        %934 = vmatprep.subr.mxu0 0.0
        %935 = vmatpush1.xpose.msra.mxu0 0.0
        %936 = vmatprep.subr.mxu0 0.0
        %937 = vmatpush1.xpose.msra.mxu0 0.0
        %938 = vmatprep.subr.mxu0 0.0
        %939 = vmatpush1.xpose.msra.mxu0 0.0
        %940 = vmatprep.subr.mxu0 0.0
        %941 = vmatpush1.xpose.msra.mxu0 0.0
        %942 = vmatprep.subr.mxu0 0.0
        %943 = vmatpush1.xpose.msra.mxu0 0.0
        %944 = vmatprep.subr.mxu0 0.0
        %945 = vmatpush1.xpose.msra.mxu0 0.0
        %946 = vmatprep.subr.mxu0 0.0
        %947 = vmatpush1.xpose.msra.mxu0 0.0
        %948 = vmatprep.subr.mxu0 0.0
        %949 = vmatpush1.xpose.msra.mxu0 0.0
        %950 = vmatprep.mubr.f32.mxu0 0.0
        %951 = vmatmul.mubr.f32.gmra.mrb[0].mxu0 %v882
        %v952 = vpop.f32.mrb[0].mxu0
        %v953 = vadd.f32 0.0, %v952
        %v954 = vpop.f32.mrb[0].mxu0
        %955 = vdwg.mxu0
        %v956 = vmul.f32 %v953, 0.35355338
        %v957 = vmul.f32 %v956, %v788
        %v958 = vsub.f32 1.0, %v788
        %v959 = vmul.f32 %v958, -1e+09
        %v960 = vadd.f32 %v957, %v959
        %v961 = vsel %vm881, %v960, -inf
        %962 = vmax.xlane.f32.xlu0 %v961
        %v963 = vpop.xlane.xlu0 %962
        %v964 = vsub.f32 %v960, %v963
        %v965 = vmul.f32 %v964, 1.442695
        %v966 = vpow.pop %v965
        %v967 = vsel %vm881, %v966, 0.0
        %968 = vadd.xlane.f32.xlu0 %v967
        %v969 = vpop.xlane.xlu0 %968
        %v970 = vrcp.pop %v969
        %v971 = vmul.f32 %v966, %v970
        %972 = vrot.lane.b32.xlu0 %v871, 64
        %v973 = vpop.permute.xlu0 %972
        %v976 = vsel %vm881, %v971, 0
        %978 = vmatprep.subr.mxu0 0.0
        %979 = vmatpush1.msra.mxu0 %v973
        %980 = vmatprep.subr.mxu0 0.0
        %981 = vmatpush1.msra.mxu0 0.0
        %982 = vmatprep.subr.mxu0 0.0
        %983 = vmatpush1.msra.mxu0 0.0
        %984 = vmatprep.subr.mxu0 0.0
        %985 = vmatpush1.msra.mxu0 0.0
        %986 = vmatprep.subr.mxu0 0.0
        %987 = vmatpush1.msra.mxu0 0.0
        %988 = vmatprep.subr.mxu0 0.0
        %989 = vmatpush1.msra.mxu0 0.0
        %990 = vmatprep.subr.mxu0 0.0
        %991 = vmatpush1.msra.mxu0 0.0
        %992 = vmatprep.subr.mxu0 0.0
        %993 = vmatpush1.msra.mxu0 0.0
        %994 = vmatprep.subr.mxu0 0.0
        %995 = vmatpush1.msra.mxu0 0.0
        %996 = vmatprep.subr.mxu0 0.0
        %997 = vmatpush1.msra.mxu0 0.0
        %998 = vmatprep.subr.mxu0 0.0
        %999 = vmatpush1.msra.mxu0 0.0
        %1000 = vmatprep.subr.mxu0 0.0
        %1001 = vmatpush1.msra.mxu0 0.0
        %1002 = vmatprep.subr.mxu0 0.0
        %1003 = vmatpush1.msra.mxu0 0.0
        %1004 = vmatprep.subr.mxu0 0.0
        %1005 = vmatpush1.msra.mxu0 0.0
        %1006 = vmatprep.subr.mxu0 0.0
        %1007 = vmatpush1.msra.mxu0 0.0
        %1008 = vmatprep.subr.mxu0 0.0
        %1009 = vmatpush1.msra.mxu0 0.0
        %1010 = vmatprep.subr.mxu0 0.0
        %1011 = vmatpush1.msra.mxu0 0.0
        %1012 = vmatprep.subr.mxu0 0.0
        %1013 = vmatpush1.msra.mxu0 0.0
        %1014 = vmatprep.subr.mxu0 0.0
        %1015 = vmatpush1.msra.mxu0 0.0
        %1016 = vmatprep.subr.mxu0 0.0
        %1017 = vmatpush1.msra.mxu0 0.0
        %1018 = vmatprep.subr.mxu0 0.0
        %1019 = vmatpush1.msra.mxu0 0.0
        %1020 = vmatprep.subr.mxu0 0.0
        %1021 = vmatpush1.msra.mxu0 0.0
        %1022 = vmatprep.subr.mxu0 0.0
        %1023 = vmatpush1.msra.mxu0 0.0
        %1024 = vmatprep.subr.mxu0 0.0
        %1025 = vmatpush1.msra.mxu0 0.0
        %1026 = vmatprep.subr.mxu0 0.0
        %1027 = vmatpush1.msra.mxu0 0.0
        %1028 = vmatprep.subr.mxu0 0.0
        %1029 = vmatpush1.msra.mxu0 0.0
        %1030 = vmatprep.subr.mxu0 0.0
        %1031 = vmatpush1.msra.mxu0 0.0
        %1032 = vmatprep.subr.mxu0 0.0
        %1033 = vmatpush1.msra.mxu0 0.0
        %1034 = vmatprep.subr.mxu0 0.0
        %1035 = vmatpush1.msra.mxu0 0.0
        %1036 = vmatprep.subr.mxu0 0.0
        %1037 = vmatpush1.msra.mxu0 0.0
        %1038 = vmatprep.subr.mxu0 0.0
        %1039 = vmatpush1.msra.mxu0 0.0
        %1040 = vmatprep.subr.mxu0 0.0
        %1041 = vmatpush1.msra.mxu0 0.0
        %1042 = vmatprep.mubr.f32.mxu0 0.0
        %1043 = vmatmul.mubr.f32.gmra.mrb[0].mxu0 %v976
        %v1044 = vpop.f32.mrb[0].mxu0
        %v1045 = vadd.f32 0.0, %v1044
        %v1046 = vpop.f32.mrb[0].mxu0
        %1047 = vdwg.mxu0
        %1048 = vrot.lane.b32.xlu0 %v871, 120
        %v1049 = vpop.permute.xlu0 %1048
        %1050 = vrot.lane.b32.xlu0 %v871, 88
        %v1051 = vpop.permute.xlu0 %1050
        %v1052 = vsel %vm881, %v1049, 0
        %v1054 = vsel %vm881, %v1051, 0
        %1056 = vmatprep.subr.mxu0 0.0
        %1057 = vmatpush1.xpose.msra.mxu0 %v1054
        %1058 = vmatprep.subr.mxu0 0.0
        %1059 = vmatpush1.xpose.msra.mxu0 0.0
        %1060 = vmatprep.subr.mxu0 0.0
        %1061 = vmatpush1.xpose.msra.mxu0 0.0
        %1062 = vmatprep.subr.mxu0 0.0
        %1063 = vmatpush1.xpose.msra.mxu0 0.0
        %1064 = vmatprep.subr.mxu0 0.0
        %1065 = vmatpush1.xpose.msra.mxu0 0.0
        %1066 = vmatprep.subr.mxu0 0.0
        %1067 = vmatpush1.xpose.msra.mxu0 0.0
        %1068 = vmatprep.subr.mxu0 0.0
        %1069 = vmatpush1.xpose.msra.mxu0 0.0
        %1070 = vmatprep.subr.mxu0 0.0
        %1071 = vmatpush1.xpose.msra.mxu0 0.0
        %1072 = vmatprep.subr.mxu0 0.0
        %1073 = vmatpush1.xpose.msra.mxu0 0.0
        %1074 = vmatprep.subr.mxu0 0.0
        %1075 = vmatpush1.xpose.msra.mxu0 0.0
        %1076 = vmatprep.subr.mxu0 0.0
        %1077 = vmatpush1.xpose.msra.mxu0 0.0
        %1078 = vmatprep.subr.mxu0 0.0
        %1079 = vmatpush1.xpose.msra.mxu0 0.0
        %1080 = vmatprep.subr.mxu0 0.0
        %1081 = vmatpush1.xpose.msra.mxu0 0.0
        %1082 = vmatprep.subr.mxu0 0.0
        %1083 = vmatpush1.xpose.msra.mxu0 0.0
        %1084 = vmatprep.subr.mxu0 0.0
        %1085 = vmatpush1.xpose.msra.mxu0 0.0
        %1086 = vmatprep.subr.mxu0 0.0
        %1087 = vmatpush1.xpose.msra.mxu0 0.0
        %1088 = vmatprep.subr.mxu0 0.0
        %1089 = vmatpush1.xpose.msra.mxu0 0.0
        %1090 = vmatprep.subr.mxu0 0.0
        %1091 = vmatpush1.xpose.msra.mxu0 0.0
        %1092 = vmatprep.subr.mxu0 0.0
        %1093 = vmatpush1.xpose.msra.mxu0 0.0
        %1094 = vmatprep.subr.mxu0 0.0
        %1095 = vmatpush1.xpose.msra.mxu0 0.0
        %1096 = vmatprep.subr.mxu0 0.0
        %1097 = vmatpush1.xpose.msra.mxu0 0.0
        %1098 = vmatprep.subr.mxu0 0.0
        %1099 = vmatpush1.xpose.msra.mxu0 0.0
        %1100 = vmatprep.subr.mxu0 0.0
        %1101 = vmatpush1.xpose.msra.mxu0 0.0
        %1102 = vmatprep.subr.mxu0 0.0
        %1103 = vmatpush1.xpose.msra.mxu0 0.0
        %1104 = vmatprep.subr.mxu0 0.0
        %1105 = vmatpush1.xpose.msra.mxu0 0.0
        %1106 = vmatprep.subr.mxu0 0.0
        %1107 = vmatpush1.xpose.msra.mxu0 0.0
        %1108 = vmatprep.subr.mxu0 0.0
        %1109 = vmatpush1.xpose.msra.mxu0 0.0
        %1110 = vmatprep.subr.mxu0 0.0
        %1111 = vmatpush1.xpose.msra.mxu0 0.0
        %1112 = vmatprep.subr.mxu0 0.0
        %1113 = vmatpush1.xpose.msra.mxu0 0.0
        %1114 = vmatprep.subr.mxu0 0.0
        %1115 = vmatpush1.xpose.msra.mxu0 0.0
        %1116 = vmatprep.subr.mxu0 0.0
        %1117 = vmatpush1.xpose.msra.mxu0 0.0
        %1118 = vmatprep.subr.mxu0 0.0
        %1119 = vmatpush1.xpose.msra.mxu0 0.0
        %1120 = vmatprep.mubr.f32.mxu0 0.0
        %1121 = vmatmul.mubr.f32.gmra.mrb[0].mxu0 %v1052
        %v1122 = vpop.f32.mrb[0].mxu0
        %v1123 = vadd.f32 0.0, %v1122
        %v1124 = vpop.f32.mrb[0].mxu0
        %1125 = vdwg.mxu0
        %v1126 = vmul.f32 %v1123, 0.35355338
        %v1127 = vmul.f32 %v1126, %v788
        %v1128 = vadd.f32 %v1127, %v959
        %v1129 = vsel %vm881, %v1128, -inf
        %1130 = vmax.xlane.f32.xlu0 %v1129
        %v1131 = vpop.xlane.xlu0 %1130
        %v1132 = vsub.f32 %v1128, %v1131
        %v1133 = vmul.f32 %v1132, 1.442695
        %v1134 = vpow.pop %v1133
        %v1135 = vsel %vm881, %v1134, 0.0
        %1136 = vadd.xlane.f32.xlu0 %v1135
        %v1137 = vpop.xlane.xlu0 %1136
        %v1138 = vrcp.pop %v1137
        %v1139 = vmul.f32 %v1134, %v1138
        %1140 = vrot.lane.b32.xlu0 %v871, 56
        %v1141 = vpop.permute.xlu0 %1140
        %v1144 = vsel %vm881, %v1139, 0
        %1146 = vmatprep.subr.mxu0 0.0
        %1147 = vmatpush1.msra.mxu0 %v1141
        %1148 = vmatprep.subr.mxu0 0.0
        %1149 = vmatpush1.msra.mxu0 0.0
        %1150 = vmatprep.subr.mxu0 0.0
        %1151 = vmatpush1.msra.mxu0 0.0
        %1152 = vmatprep.subr.mxu0 0.0
        %1153 = vmatpush1.msra.mxu0 0.0
        %1154 = vmatprep.subr.mxu0 0.0
        %1155 = vmatpush1.msra.mxu0 0.0
        %1156 = vmatprep.subr.mxu0 0.0
        %1157 = vmatpush1.msra.mxu0 0.0
        %1158 = vmatprep.subr.mxu0 0.0
        %1159 = vmatpush1.msra.mxu0 0.0
        %1160 = vmatprep.subr.mxu0 0.0
        %1161 = vmatpush1.msra.mxu0 0.0
        %1162 = vmatprep.subr.mxu0 0.0
        %1163 = vmatpush1.msra.mxu0 0.0
        %1164 = vmatprep.subr.mxu0 0.0
        %1165 = vmatpush1.msra.mxu0 0.0
        %1166 = vmatprep.subr.mxu0 0.0
        %1167 = vmatpush1.msra.mxu0 0.0
        %1168 = vmatprep.subr.mxu0 0.0
        %1169 = vmatpush1.msra.mxu0 0.0
        %1170 = vmatprep.subr.mxu0 0.0
        %1171 = vmatpush1.msra.mxu0 0.0
        %1172 = vmatprep.subr.mxu0 0.0
        %1173 = vmatpush1.msra.mxu0 0.0
        %1174 = vmatprep.subr.mxu0 0.0
        %1175 = vmatpush1.msra.mxu0 0.0
        %1176 = vmatprep.subr.mxu0 0.0
        %1177 = vmatpush1.msra.mxu0 0.0
        %1178 = vmatprep.subr.mxu0 0.0
        %1179 = vmatpush1.msra.mxu0 0.0
        %1180 = vmatprep.subr.mxu0 0.0
        %1181 = vmatpush1.msra.mxu0 0.0
        %1182 = vmatprep.subr.mxu0 0.0
        %1183 = vmatpush1.msra.mxu0 0.0
        %1184 = vmatprep.subr.mxu0 0.0
        %1185 = vmatpush1.msra.mxu0 0.0
        %1186 = vmatprep.subr.mxu0 0.0
        %1187 = vmatpush1.msra.mxu0 0.0
        %1188 = vmatprep.subr.mxu0 0.0
        %1189 = vmatpush1.msra.mxu0 0.0
        %1190 = vmatprep.subr.mxu0 0.0
        %1191 = vmatpush1.msra.mxu0 0.0
        %1192 = vmatprep.subr.mxu0 0.0
        %1193 = vmatpush1.msra.mxu0 0.0
        %1194 = vmatprep.subr.mxu0 0.0
        %1195 = vmatpush1.msra.mxu0 0.0
        %1196 = vmatprep.subr.mxu0 0.0
        %1197 = vmatpush1.msra.mxu0 0.0
        %1198 = vmatprep.subr.mxu0 0.0
        %1199 = vmatpush1.msra.mxu0 0.0
        %1200 = vmatprep.subr.mxu0 0.0
        %1201 = vmatpush1.msra.mxu0 0.0
        %1202 = vmatprep.subr.mxu0 0.0
        %1203 = vmatpush1.msra.mxu0 0.0
        %1204 = vmatprep.subr.mxu0 0.0
        %1205 = vmatpush1.msra.mxu0 0.0
        %1206 = vmatprep.subr.mxu0 0.0
        %1207 = vmatpush1.msra.mxu0 0.0
        %1208 = vmatprep.subr.mxu0 0.0
        %1209 = vmatpush1.msra.mxu0 0.0
        %1210 = vmatprep.mubr.f32.mxu0 0.0
        %1211 = vmatmul.mubr.f32.gmra.mrb[0].mxu0 %v1144
        %v1212 = vpop.f32.mrb[0].mxu0
        %v1213 = vadd.f32 0.0, %v1212
        %v1214 = vpop.f32.mrb[0].mxu0
        %1215 = vdwg.mxu0
        %v1217 = vsel %vm881, %v1213, 0
        %1219 = vmatprep.subr.mxu0 0.0
        %1220 = vmatpush1.msra.mxu0 %v875
        %1221 = vmatprep.subr.mxu0 0.0
        %1222 = vmatpush1.msra.mxu0 0.0
        %1223 = vmatprep.subr.mxu0 0.0
        %1224 = vmatpush1.msra.mxu0 0.0
        %1225 = vmatprep.subr.mxu0 0.0
        %1226 = vmatpush1.msra.mxu0 0.0
        %1227 = vmatprep.subr.mxu0 0.0
        %1228 = vmatpush1.msra.mxu0 0.0
        %1229 = vmatprep.subr.mxu0 0.0
        %1230 = vmatpush1.msra.mxu0 0.0
        %1231 = vmatprep.subr.mxu0 0.0
        %1232 = vmatpush1.msra.mxu0 0.0
        %1233 = vmatprep.subr.mxu0 0.0
        %1234 = vmatpush1.msra.mxu0 0.0
        %1235 = vmatprep.subr.mxu0 0.0
        %1236 = vmatpush1.msra.mxu0 0.0
        %1237 = vmatprep.subr.mxu0 0.0
        %1238 = vmatpush1.msra.mxu0 0.0
        %1239 = vmatprep.subr.mxu0 0.0
        %1240 = vmatpush1.msra.mxu0 0.0
        %1241 = vmatprep.subr.mxu0 0.0
        %1242 = vmatpush1.msra.mxu0 0.0
        %1243 = vmatprep.subr.mxu0 0.0
        %1244 = vmatpush1.msra.mxu0 0.0
        %1245 = vmatprep.subr.mxu0 0.0
        %1246 = vmatpush1.msra.mxu0 0.0
        %1247 = vmatprep.subr.mxu0 0.0
        %1248 = vmatpush1.msra.mxu0 0.0
        %1249 = vmatprep.subr.mxu0 0.0
        %1250 = vmatpush1.msra.mxu0 0.0
        %1251 = vmatprep.subr.mxu0 0.0
        %1252 = vmatpush1.msra.mxu0 0.0
        %1253 = vmatprep.subr.mxu0 0.0
        %1254 = vmatpush1.msra.mxu0 0.0
        %1255 = vmatprep.subr.mxu0 0.0
        %1256 = vmatpush1.msra.mxu0 0.0
        %1257 = vmatprep.subr.mxu0 0.0
        %1258 = vmatpush1.msra.mxu0 0.0
        %1259 = vmatprep.subr.mxu0 0.0
        %1260 = vmatpush1.msra.mxu0 0.0
        %1261 = vmatprep.subr.mxu0 0.0
        %1262 = vmatpush1.msra.mxu0 0.0
        %1263 = vmatprep.subr.mxu0 0.0
        %1264 = vmatpush1.msra.mxu0 0.0
        %1265 = vmatprep.subr.mxu0 0.0
        %1266 = vmatpush1.msra.mxu0 0.0
        %1267 = vmatprep.subr.mxu0 0.0
        %1268 = vmatpush1.msra.mxu0 0.0
        %1269 = vmatprep.subr.mxu0 0.0
        %1270 = vmatpush1.msra.mxu0 0.0
        %1271 = vmatprep.subr.mxu0 0.0
        %1272 = vmatpush1.msra.mxu0 0.0
        %1273 = vmatprep.subr.mxu0 0.0
        %1274 = vmatpush1.msra.mxu0 0.0
        %1275 = vmatprep.subr.mxu0 0.0
        %1276 = vmatpush1.msra.mxu0 0.0
        %1277 = vmatprep.subr.mxu0 0.0
        %1278 = vmatpush1.msra.mxu0 0.0
        %1279 = vmatprep.subr.mxu0 0.0
        %1280 = vmatpush1.msra.mxu0 0.0
        %1281 = vmatprep.subr.mxu0 0.0
        %1282 = vmatpush1.msra.mxu0 0.0
        %1283 = vmatprep.mubr.f32.mxu0 0.0
        %1284 = vmatmul.mubr.f32.gmra.mrb[0].mxu0 %v1217
        %v1285 = vpop.f32.mrb[0].mxu0
        %v1286 = vadd.f32 0.0, %v1285
        %v1287 = vpop.f32.mrb[0].mxu0
        %1288 = vdwg.mxu0
        %v1290 = vsel %vm881, %v1045, 0
        %1292 = vmatprep.subr.mxu0 0.0
        %1293 = vmatpush1.msra.mxu0 %v874
        %1294 = vmatprep.subr.mxu0 0.0
        %1295 = vmatpush1.msra.mxu0 0.0
        %1296 = vmatprep.subr.mxu0 0.0
        %1297 = vmatpush1.msra.mxu0 0.0
        %1298 = vmatprep.subr.mxu0 0.0
        %1299 = vmatpush1.msra.mxu0 0.0
        %1300 = vmatprep.subr.mxu0 0.0
        %1301 = vmatpush1.msra.mxu0 0.0
        %1302 = vmatprep.subr.mxu0 0.0
        %1303 = vmatpush1.msra.mxu0 0.0
        %1304 = vmatprep.subr.mxu0 0.0
        %1305 = vmatpush1.msra.mxu0 0.0
        %1306 = vmatprep.subr.mxu0 0.0
        %1307 = vmatpush1.msra.mxu0 0.0
        %1308 = vmatprep.subr.mxu0 0.0
        %1309 = vmatpush1.msra.mxu0 0.0
        %1310 = vmatprep.subr.mxu0 0.0
        %1311 = vmatpush1.msra.mxu0 0.0
        %1312 = vmatprep.subr.mxu0 0.0
        %1313 = vmatpush1.msra.mxu0 0.0
        %1314 = vmatprep.subr.mxu0 0.0
        %1315 = vmatpush1.msra.mxu0 0.0
        %1316 = vmatprep.subr.mxu0 0.0
        %1317 = vmatpush1.msra.mxu0 0.0
        %1318 = vmatprep.subr.mxu0 0.0
        %1319 = vmatpush1.msra.mxu0 0.0
        %1320 = vmatprep.subr.mxu0 0.0
        %1321 = vmatpush1.msra.mxu0 0.0
        %1322 = vmatprep.subr.mxu0 0.0
        %1323 = vmatpush1.msra.mxu0 0.0
        %1324 = vmatprep.subr.mxu0 0.0
        %1325 = vmatpush1.msra.mxu0 0.0
        %1326 = vmatprep.subr.mxu0 0.0
        %1327 = vmatpush1.msra.mxu0 0.0
        %1328 = vmatprep.subr.mxu0 0.0
        %1329 = vmatpush1.msra.mxu0 0.0
        %1330 = vmatprep.subr.mxu0 0.0
        %1331 = vmatpush1.msra.mxu0 0.0
        %1332 = vmatprep.subr.mxu0 0.0
        %1333 = vmatpush1.msra.mxu0 0.0
        %1334 = vmatprep.subr.mxu0 0.0
        %1335 = vmatpush1.msra.mxu0 0.0
        %1336 = vmatprep.subr.mxu0 0.0
        %1337 = vmatpush1.msra.mxu0 0.0
        %1338 = vmatprep.subr.mxu0 0.0
        %1339 = vmatpush1.msra.mxu0 0.0
        %1340 = vmatprep.subr.mxu0 0.0
        %1341 = vmatpush1.msra.mxu0 0.0
        %1342 = vmatprep.subr.mxu0 0.0
        %1343 = vmatpush1.msra.mxu0 0.0
        %1344 = vmatprep.subr.mxu0 0.0
        %1345 = vmatpush1.msra.mxu0 0.0
        %1346 = vmatprep.subr.mxu0 0.0
        %1347 = vmatpush1.msra.mxu0 0.0
        %1348 = vmatprep.subr.mxu0 0.0
        %1349 = vmatpush1.msra.mxu0 0.0
        %1350 = vmatprep.subr.mxu0 0.0
        %1351 = vmatpush1.msra.mxu0 0.0
        %1352 = vmatprep.subr.mxu0 0.0
        %1353 = vmatpush1.msra.mxu0 0.0
        %1354 = vmatprep.subr.mxu0 0.0
        %1355 = vmatpush1.msra.mxu0 0.0
        %1356 = vmatprep.mubr.f32.mxu0 0.0
        %1357 = vmatmul.mubr.f32.gmra.mrb[0].mxu0 %v1290
        %v1358 = vpop.f32.mrb[0].mxu0
        %v1359 = vadd.f32 %v1286, %v1358
        %v1360 = vpop.f32.mrb[0].mxu0
        %1361 = vdwg.mxu0
        %1362 = vrot.lane.b32.xlu0 %v871, 112
        %v1363 = vpop.permute.xlu0 %1362
        %1364 = vrot.lane.b32.xlu0 %v871, 80
        %v1365 = vpop.permute.xlu0 %1364
        %v1366 = vsel %vm881, %v1363, 0
        %v1368 = vsel %vm881, %v1365, 0
        %1370 = vmatprep.subr.mxu0 0.0
        %1371 = vmatpush1.xpose.msra.mxu0 %v1368
        %1372 = vmatprep.subr.mxu0 0.0
        %1373 = vmatpush1.xpose.msra.mxu0 0.0
        %1374 = vmatprep.subr.mxu0 0.0
        %1375 = vmatpush1.xpose.msra.mxu0 0.0
        %1376 = vmatprep.subr.mxu0 0.0
        %1377 = vmatpush1.xpose.msra.mxu0 0.0
        %1378 = vmatprep.subr.mxu0 0.0
        %1379 = vmatpush1.xpose.msra.mxu0 0.0
        %1380 = vmatprep.subr.mxu0 0.0
        %1381 = vmatpush1.xpose.msra.mxu0 0.0
        %1382 = vmatprep.subr.mxu0 0.0
        %1383 = vmatpush1.xpose.msra.mxu0 0.0
        %1384 = vmatprep.subr.mxu0 0.0
        %1385 = vmatpush1.xpose.msra.mxu0 0.0
        %1386 = vmatprep.subr.mxu0 0.0
        %1387 = vmatpush1.xpose.msra.mxu0 0.0
        %1388 = vmatprep.subr.mxu0 0.0
        %1389 = vmatpush1.xpose.msra.mxu0 0.0
        %1390 = vmatprep.subr.mxu0 0.0
        %1391 = vmatpush1.xpose.msra.mxu0 0.0
        %1392 = vmatprep.subr.mxu0 0.0
        %1393 = vmatpush1.xpose.msra.mxu0 0.0
        %1394 = vmatprep.subr.mxu0 0.0
        %1395 = vmatpush1.xpose.msra.mxu0 0.0
        %1396 = vmatprep.subr.mxu0 0.0
        %1397 = vmatpush1.xpose.msra.mxu0 0.0
        %1398 = vmatprep.subr.mxu0 0.0
        %1399 = vmatpush1.xpose.msra.mxu0 0.0
        %1400 = vmatprep.subr.mxu0 0.0
        %1401 = vmatpush1.xpose.msra.mxu0 0.0
        %1402 = vmatprep.subr.mxu0 0.0
        %1403 = vmatpush1.xpose.msra.mxu0 0.0
        %1404 = vmatprep.subr.mxu0 0.0
        %1405 = vmatpush1.xpose.msra.mxu0 0.0
        %1406 = vmatprep.subr.mxu0 0.0
        %1407 = vmatpush1.xpose.msra.mxu0 0.0
        %1408 = vmatprep.subr.mxu0 0.0
        %1409 = vmatpush1.xpose.msra.mxu0 0.0
        %1410 = vmatprep.subr.mxu0 0.0
        %1411 = vmatpush1.xpose.msra.mxu0 0.0
        %1412 = vmatprep.subr.mxu0 0.0
        %1413 = vmatpush1.xpose.msra.mxu0 0.0
        %1414 = vmatprep.subr.mxu0 0.0
        %1415 = vmatpush1.xpose.msra.mxu0 0.0
        %1416 = vmatprep.subr.mxu0 0.0
        %1417 = vmatpush1.xpose.msra.mxu0 0.0
        %1418 = vmatprep.subr.mxu0 0.0
        %1419 = vmatpush1.xpose.msra.mxu0 0.0
        %1420 = vmatprep.subr.mxu0 0.0
        %1421 = vmatpush1.xpose.msra.mxu0 0.0
        %1422 = vmatprep.subr.mxu0 0.0
        %1423 = vmatpush1.xpose.msra.mxu0 0.0
        %1424 = vmatprep.subr.mxu0 0.0
        %1425 = vmatpush1.xpose.msra.mxu0 0.0
        %1426 = vmatprep.subr.mxu0 0.0
        %1427 = vmatpush1.xpose.msra.mxu0 0.0
        %1428 = vmatprep.subr.mxu0 0.0
        %1429 = vmatpush1.xpose.msra.mxu0 0.0
        %1430 = vmatprep.subr.mxu0 0.0
        %1431 = vmatpush1.xpose.msra.mxu0 0.0
        %1432 = vmatprep.subr.mxu0 0.0
        %1433 = vmatpush1.xpose.msra.mxu0 0.0
        %1434 = vmatprep.mubr.f32.mxu0 0.0
        %1435 = vmatmul.mubr.f32.gmra.mrb[0].mxu0 %v1366
        %v1436 = vpop.f32.mrb[0].mxu0
        %v1437 = vadd.f32 0.0, %v1436
        %v1438 = vpop.f32.mrb[0].mxu0
        %1439 = vdwg.mxu0
        %v1440 = vmul.f32 %v1437, 0.35355338
        %v1441 = vmul.f32 %v1440, %v788
        %v1442 = vadd.f32 %v1441, %v959
        %v1443 = vsel %vm881, %v1442, -inf
        %1444 = vmax.xlane.f32.xlu0 %v1443
        %v1445 = vpop.xlane.xlu0 %1444
        %v1446 = vsub.f32 %v1442, %v1445
        %v1447 = vmul.f32 %v1446, 1.442695
        %v1448 = vpow.pop %v1447
        %v1449 = vsel %vm881, %v1448, 0.0
        %1450 = vadd.xlane.f32.xlu0 %v1449
        %v1451 = vpop.xlane.xlu0 %1450
        %v1452 = vrcp.pop %v1451
        %v1453 = vmul.f32 %v1448, %v1452
        %1454 = vrot.lane.b32.xlu0 %v871, 48
        %v1455 = vpop.permute.xlu0 %1454
        %v1458 = vsel %vm881, %v1453, 0
        %1460 = vmatprep.subr.mxu0 0.0
        %1461 = vmatpush1.msra.mxu0 %v1455
        %1462 = vmatprep.subr.mxu0 0.0
        %1463 = vmatpush1.msra.mxu0 0.0
        %1464 = vmatprep.subr.mxu0 0.0
        %1465 = vmatpush1.msra.mxu0 0.0
        %1466 = vmatprep.subr.mxu0 0.0
        %1467 = vmatpush1.msra.mxu0 0.0
        %1468 = vmatprep.subr.mxu0 0.0
        %1469 = vmatpush1.msra.mxu0 0.0
        %1470 = vmatprep.subr.mxu0 0.0
        %1471 = vmatpush1.msra.mxu0 0.0
        %1472 = vmatprep.subr.mxu0 0.0
        %1473 = vmatpush1.msra.mxu0 0.0
        %1474 = vmatprep.subr.mxu0 0.0
        %1475 = vmatpush1.msra.mxu0 0.0
        %1476 = vmatprep.subr.mxu0 0.0
        %1477 = vmatpush1.msra.mxu0 0.0
        %1478 = vmatprep.subr.mxu0 0.0
        %1479 = vmatpush1.msra.mxu0 0.0
        %1480 = vmatprep.subr.mxu0 0.0
        %1481 = vmatpush1.msra.mxu0 0.0
        %1482 = vmatprep.subr.mxu0 0.0
        %1483 = vmatpush1.msra.mxu0 0.0
        %1484 = vmatprep.subr.mxu0 0.0
        %1485 = vmatpush1.msra.mxu0 0.0
        %1486 = vmatprep.subr.mxu0 0.0
        %1487 = vmatpush1.msra.mxu0 0.0
        %1488 = vmatprep.subr.mxu0 0.0
        %1489 = vmatpush1.msra.mxu0 0.0
        %1490 = vmatprep.subr.mxu0 0.0
        %1491 = vmatpush1.msra.mxu0 0.0
        %1492 = vmatprep.subr.mxu0 0.0
        %1493 = vmatpush1.msra.mxu0 0.0
        %1494 = vmatprep.subr.mxu0 0.0
        %1495 = vmatpush1.msra.mxu0 0.0
        %1496 = vmatprep.subr.mxu0 0.0
        %1497 = vmatpush1.msra.mxu0 0.0
        %1498 = vmatprep.subr.mxu0 0.0
        %1499 = vmatpush1.msra.mxu0 0.0
        %1500 = vmatprep.subr.mxu0 0.0
        %1501 = vmatpush1.msra.mxu0 0.0
        %1502 = vmatprep.subr.mxu0 0.0
        %1503 = vmatpush1.msra.mxu0 0.0
        %1504 = vmatprep.subr.mxu0 0.0
        %1505 = vmatpush1.msra.mxu0 0.0
        %1506 = vmatprep.subr.mxu0 0.0
        %1507 = vmatpush1.msra.mxu0 0.0
        %1508 = vmatprep.subr.mxu0 0.0
        %1509 = vmatpush1.msra.mxu0 0.0
        %1510 = vmatprep.subr.mxu0 0.0
        %1511 = vmatpush1.msra.mxu0 0.0
        %1512 = vmatprep.subr.mxu0 0.0
        %1513 = vmatpush1.msra.mxu0 0.0
        %1514 = vmatprep.subr.mxu0 0.0
        %1515 = vmatpush1.msra.mxu0 0.0
        %1516 = vmatprep.subr.mxu0 0.0
        %1517 = vmatpush1.msra.mxu0 0.0
        %1518 = vmatprep.subr.mxu0 0.0
        %1519 = vmatpush1.msra.mxu0 0.0
        %1520 = vmatprep.subr.mxu0 0.0
        %1521 = vmatpush1.msra.mxu0 0.0
        %1522 = vmatprep.subr.mxu0 0.0
        %1523 = vmatpush1.msra.mxu0 0.0
        %1524 = vmatprep.mubr.f32.mxu0 0.0
        %1525 = vmatmul.mubr.f32.gmra.mrb[0].mxu0 %v1458
        %v1526 = vpop.f32.mrb[0].mxu0
        %v1527 = vadd.f32 0.0, %v1526
        %v1528 = vpop.f32.mrb[0].mxu0
        %1529 = vdwg.mxu0
        %v1531 = vsel %vm881, %v1527, 0
        %1533 = vmatprep.subr.mxu0 0.0
        %1534 = vmatpush1.msra.mxu0 %v876
        %1535 = vmatprep.subr.mxu0 0.0
        %1536 = vmatpush1.msra.mxu0 0.0
        %1537 = vmatprep.subr.mxu0 0.0
        %1538 = vmatpush1.msra.mxu0 0.0
        %1539 = vmatprep.subr.mxu0 0.0
        %1540 = vmatpush1.msra.mxu0 0.0
        %1541 = vmatprep.subr.mxu0 0.0
        %1542 = vmatpush1.msra.mxu0 0.0
        %1543 = vmatprep.subr.mxu0 0.0
        %1544 = vmatpush1.msra.mxu0 0.0
        %1545 = vmatprep.subr.mxu0 0.0
        %1546 = vmatpush1.msra.mxu0 0.0
        %1547 = vmatprep.subr.mxu0 0.0
        %1548 = vmatpush1.msra.mxu0 0.0
        %1549 = vmatprep.subr.mxu0 0.0
        %1550 = vmatpush1.msra.mxu0 0.0
        %1551 = vmatprep.subr.mxu0 0.0
        %1552 = vmatpush1.msra.mxu0 0.0
        %1553 = vmatprep.subr.mxu0 0.0
        %1554 = vmatpush1.msra.mxu0 0.0
        %1555 = vmatprep.subr.mxu0 0.0
        %1556 = vmatpush1.msra.mxu0 0.0
        %1557 = vmatprep.subr.mxu0 0.0
        %1558 = vmatpush1.msra.mxu0 0.0
        %1559 = vmatprep.subr.mxu0 0.0
        %1560 = vmatpush1.msra.mxu0 0.0
        %1561 = vmatprep.subr.mxu0 0.0
        %1562 = vmatpush1.msra.mxu0 0.0
        %1563 = vmatprep.subr.mxu0 0.0
        %1564 = vmatpush1.msra.mxu0 0.0
        %1565 = vmatprep.subr.mxu0 0.0
        %1566 = vmatpush1.msra.mxu0 0.0
        %1567 = vmatprep.subr.mxu0 0.0
        %1568 = vmatpush1.msra.mxu0 0.0
        %1569 = vmatprep.subr.mxu0 0.0
        %1570 = vmatpush1.msra.mxu0 0.0
        %1571 = vmatprep.subr.mxu0 0.0
        %1572 = vmatpush1.msra.mxu0 0.0
        %1573 = vmatprep.subr.mxu0 0.0
        %1574 = vmatpush1.msra.mxu0 0.0
        %1575 = vmatprep.subr.mxu0 0.0
        %1576 = vmatpush1.msra.mxu0 0.0
        %1577 = vmatprep.subr.mxu0 0.0
        %1578 = vmatpush1.msra.mxu0 0.0
        %1579 = vmatprep.subr.mxu0 0.0
        %1580 = vmatpush1.msra.mxu0 0.0
        %1581 = vmatprep.subr.mxu0 0.0
        %1582 = vmatpush1.msra.mxu0 0.0
        %1583 = vmatprep.subr.mxu0 0.0
        %1584 = vmatpush1.msra.mxu0 0.0
        %1585 = vmatprep.subr.mxu0 0.0
        %1586 = vmatpush1.msra.mxu0 0.0
        %1587 = vmatprep.subr.mxu0 0.0
        %1588 = vmatpush1.msra.mxu0 0.0
        %1589 = vmatprep.subr.mxu0 0.0
        %1590 = vmatpush1.msra.mxu0 0.0
        %1591 = vmatprep.subr.mxu0 0.0
        %1592 = vmatpush1.msra.mxu0 0.0
        %1593 = vmatprep.subr.mxu0 0.0
        %1594 = vmatpush1.msra.mxu0 0.0
        %1595 = vmatprep.subr.mxu0 0.0
        %1596 = vmatpush1.msra.mxu0 0.0
        %1597 = vmatprep.mubr.f32.mxu0 0.0
        %1598 = vmatmul.mubr.f32.gmra.mrb[0].mxu0 %v1531
        %v1599 = vpop.f32.mrb[0].mxu0
        %v1600 = vadd.f32 0.0, %v1599
        %v1601 = vpop.f32.mrb[0].mxu0
        %1602 = vdwg.mxu0
        %v1603 = vadd.f32 %v1359, %v1600
        %1604 = vrot.lane.b32.xlu0 %v871, 104
        %v1605 = vpop.permute.xlu0 %1604
        %1606 = vrot.lane.b32.xlu0 %v871, 72
        %v1607 = vpop.permute.xlu0 %1606
        %v1608 = vsel %vm881, %v1605, 0
        %v1610 = vsel %vm881, %v1607, 0
        %1612 = vmatprep.subr.mxu0 0.0
        %1613 = vmatpush1.xpose.msra.mxu0 %v1610
        %1614 = vmatprep.subr.mxu0 0.0
        %1615 = vmatpush1.xpose.msra.mxu0 0.0
        %1616 = vmatprep.subr.mxu0 0.0
        %1617 = vmatpush1.xpose.msra.mxu0 0.0
        %1618 = vmatprep.subr.mxu0 0.0
        %1619 = vmatpush1.xpose.msra.mxu0 0.0
        %1620 = vmatprep.subr.mxu0 0.0
        %1621 = vmatpush1.xpose.msra.mxu0 0.0
        %1622 = vmatprep.subr.mxu0 0.0
        %1623 = vmatpush1.xpose.msra.mxu0 0.0
        %1624 = vmatprep.subr.mxu0 0.0
        %1625 = vmatpush1.xpose.msra.mxu0 0.0
        %1626 = vmatprep.subr.mxu0 0.0
        %1627 = vmatpush1.xpose.msra.mxu0 0.0
        %1628 = vmatprep.subr.mxu0 0.0
        %1629 = vmatpush1.xpose.msra.mxu0 0.0
        %1630 = vmatprep.subr.mxu0 0.0
        %1631 = vmatpush1.xpose.msra.mxu0 0.0
        %1632 = vmatprep.subr.mxu0 0.0
        %1633 = vmatpush1.xpose.msra.mxu0 0.0
        %1634 = vmatprep.subr.mxu0 0.0
        %1635 = vmatpush1.xpose.msra.mxu0 0.0
        %1636 = vmatprep.subr.mxu0 0.0
        %1637 = vmatpush1.xpose.msra.mxu0 0.0
        %1638 = vmatprep.subr.mxu0 0.0
        %1639 = vmatpush1.xpose.msra.mxu0 0.0
        %1640 = vmatprep.subr.mxu0 0.0
        %1641 = vmatpush1.xpose.msra.mxu0 0.0
        %1642 = vmatprep.subr.mxu0 0.0
        %1643 = vmatpush1.xpose.msra.mxu0 0.0
        %1644 = vmatprep.subr.mxu0 0.0
        %1645 = vmatpush1.xpose.msra.mxu0 0.0
        %1646 = vmatprep.subr.mxu0 0.0
        %1647 = vmatpush1.xpose.msra.mxu0 0.0
        %1648 = vmatprep.subr.mxu0 0.0
        %1649 = vmatpush1.xpose.msra.mxu0 0.0
        %1650 = vmatprep.subr.mxu0 0.0
        %1651 = vmatpush1.xpose.msra.mxu0 0.0
        %1652 = vmatprep.subr.mxu0 0.0
        %1653 = vmatpush1.xpose.msra.mxu0 0.0
        %1654 = vmatprep.subr.mxu0 0.0
        %1655 = vmatpush1.xpose.msra.mxu0 0.0
        %1656 = vmatprep.subr.mxu0 0.0
        %1657 = vmatpush1.xpose.msra.mxu0 0.0
        %1658 = vmatprep.subr.mxu0 0.0
        %1659 = vmatpush1.xpose.msra.mxu0 0.0
        %1660 = vmatprep.subr.mxu0 0.0
        %1661 = vmatpush1.xpose.msra.mxu0 0.0
        %1662 = vmatprep.subr.mxu0 0.0
        %1663 = vmatpush1.xpose.msra.mxu0 0.0
        %1664 = vmatprep.subr.mxu0 0.0
        %1665 = vmatpush1.xpose.msra.mxu0 0.0
        %1666 = vmatprep.subr.mxu0 0.0
        %1667 = vmatpush1.xpose.msra.mxu0 0.0
        %1668 = vmatprep.subr.mxu0 0.0
        %1669 = vmatpush1.xpose.msra.mxu0 0.0
        %1670 = vmatprep.subr.mxu0 0.0
        %1671 = vmatpush1.xpose.msra.mxu0 0.0
        %1672 = vmatprep.subr.mxu0 0.0
        %1673 = vmatpush1.xpose.msra.mxu0 0.0
        %1674 = vmatprep.subr.mxu0 0.0
        %1675 = vmatpush1.xpose.msra.mxu0 0.0
        %1676 = vmatprep.mubr.f32.mxu0 0.0
        %1677 = vmatmul.mubr.f32.gmra.mrb[0].mxu0 %v1608
        %v1678 = vpop.f32.mrb[0].mxu0
        %v1679 = vadd.f32 0.0, %v1678
        %v1680 = vpop.f32.mrb[0].mxu0
        %1681 = vdwg.mxu0
        %v1682 = vmul.f32 %v1679, 0.35355338
        %v1683 = vmul.f32 %v1682, %v788
        %v1684 = vadd.f32 %v1683, %v959
        %v1685 = vsel %vm881, %v1684, -inf
        %1686 = vmax.xlane.f32.xlu0 %v1685
        %v1687 = vpop.xlane.xlu0 %1686
        %v1688 = vsub.f32 %v1684, %v1687
        %v1689 = vmul.f32 %v1688, 1.442695
        %v1690 = vpow.pop %v1689
        %v1691 = vsel %vm881, %v1690, 0.0
        %1692 = vadd.xlane.f32.xlu0 %v1691
        %v1693 = vpop.xlane.xlu0 %1692
        %v1694 = vrcp.pop %v1693
        %v1695 = vmul.f32 %v1690, %v1694
        %1696 = vrot.lane.b32.xlu0 %v871, 40
        %v1697 = vpop.permute.xlu0 %1696
        %v1700 = vsel %vm881, %v1695, 0
        %1702 = vmatprep.subr.mxu0 0.0
        %1703 = vmatpush1.msra.mxu0 %v1697
        %1704 = vmatprep.subr.mxu0 0.0
        %1705 = vmatpush1.msra.mxu0 0.0
        %1706 = vmatprep.subr.mxu0 0.0
        %1707 = vmatpush1.msra.mxu0 0.0
        %1708 = vmatprep.subr.mxu0 0.0
        %1709 = vmatpush1.msra.mxu0 0.0
        %1710 = vmatprep.subr.mxu0 0.0
        %1711 = vmatpush1.msra.mxu0 0.0
        %1712 = vmatprep.subr.mxu0 0.0
        %1713 = vmatpush1.msra.mxu0 0.0
        %1714 = vmatprep.subr.mxu0 0.0
        %1715 = vmatpush1.msra.mxu0 0.0
        %1716 = vmatprep.subr.mxu0 0.0
        %1717 = vmatpush1.msra.mxu0 0.0
        %1718 = vmatprep.subr.mxu0 0.0
        %1719 = vmatpush1.msra.mxu0 0.0
        %1720 = vmatprep.subr.mxu0 0.0
        %1721 = vmatpush1.msra.mxu0 0.0
        %1722 = vmatprep.subr.mxu0 0.0
        %1723 = vmatpush1.msra.mxu0 0.0
        %1724 = vmatprep.subr.mxu0 0.0
        %1725 = vmatpush1.msra.mxu0 0.0
        %1726 = vmatprep.subr.mxu0 0.0
        %1727 = vmatpush1.msra.mxu0 0.0
        %1728 = vmatprep.subr.mxu0 0.0
        %1729 = vmatpush1.msra.mxu0 0.0
        %1730 = vmatprep.subr.mxu0 0.0
        %1731 = vmatpush1.msra.mxu0 0.0
        %1732 = vmatprep.subr.mxu0 0.0
        %1733 = vmatpush1.msra.mxu0 0.0
        %1734 = vmatprep.subr.mxu0 0.0
        %1735 = vmatpush1.msra.mxu0 0.0
        %1736 = vmatprep.subr.mxu0 0.0
        %1737 = vmatpush1.msra.mxu0 0.0
        %1738 = vmatprep.subr.mxu0 0.0
        %1739 = vmatpush1.msra.mxu0 0.0
        %1740 = vmatprep.subr.mxu0 0.0
        %1741 = vmatpush1.msra.mxu0 0.0
        %1742 = vmatprep.subr.mxu0 0.0
        %1743 = vmatpush1.msra.mxu0 0.0
        %1744 = vmatprep.subr.mxu0 0.0
        %1745 = vmatpush1.msra.mxu0 0.0
        %1746 = vmatprep.subr.mxu0 0.0
        %1747 = vmatpush1.msra.mxu0 0.0
        %1748 = vmatprep.subr.mxu0 0.0
        %1749 = vmatpush1.msra.mxu0 0.0
        %1750 = vmatprep.subr.mxu0 0.0
        %1751 = vmatpush1.msra.mxu0 0.0
        %1752 = vmatprep.subr.mxu0 0.0
        %1753 = vmatpush1.msra.mxu0 0.0
        %1754 = vmatprep.subr.mxu0 0.0
        %1755 = vmatpush1.msra.mxu0 0.0
        %1756 = vmatprep.subr.mxu0 0.0
        %1757 = vmatpush1.msra.mxu0 0.0
        %1758 = vmatprep.subr.mxu0 0.0
        %1759 = vmatpush1.msra.mxu0 0.0
        %1760 = vmatprep.subr.mxu0 0.0
        %1761 = vmatpush1.msra.mxu0 0.0
        %1762 = vmatprep.subr.mxu0 0.0
        %1763 = vmatpush1.msra.mxu0 0.0
        %1764 = vmatprep.subr.mxu0 0.0
        %1765 = vmatpush1.msra.mxu0 0.0
        %1766 = vmatprep.mubr.f32.mxu0 0.0
        %1767 = vmatmul.mubr.f32.gmra.mrb[0].mxu0 %v1700
        %v1768 = vpop.f32.mrb[0].mxu0
        %v1769 = vadd.f32 0.0, %v1768
        %v1770 = vpop.f32.mrb[0].mxu0
        %1771 = vdwg.mxu0
        %v1773 = vsel %vm881, %v1769, 0
        %1775 = vmatprep.subr.mxu0 0.0
        %1776 = vmatpush1.msra.mxu0 %v877
        %1777 = vmatprep.subr.mxu0 0.0
        %1778 = vmatpush1.msra.mxu0 0.0
        %1779 = vmatprep.subr.mxu0 0.0
        %1780 = vmatpush1.msra.mxu0 0.0
        %1781 = vmatprep.subr.mxu0 0.0
        %1782 = vmatpush1.msra.mxu0 0.0
        %1783 = vmatprep.subr.mxu0 0.0
        %1784 = vmatpush1.msra.mxu0 0.0
        %1785 = vmatprep.subr.mxu0 0.0
        %1786 = vmatpush1.msra.mxu0 0.0
        %1787 = vmatprep.subr.mxu0 0.0
        %1788 = vmatpush1.msra.mxu0 0.0
        %1789 = vmatprep.subr.mxu0 0.0
        %1790 = vmatpush1.msra.mxu0 0.0
        %1791 = vmatprep.subr.mxu0 0.0
        %1792 = vmatpush1.msra.mxu0 0.0
        %1793 = vmatprep.subr.mxu0 0.0
        %1794 = vmatpush1.msra.mxu0 0.0
        %1795 = vmatprep.subr.mxu0 0.0
        %1796 = vmatpush1.msra.mxu0 0.0
        %1797 = vmatprep.subr.mxu0 0.0
        %1798 = vmatpush1.msra.mxu0 0.0
        %1799 = vmatprep.subr.mxu0 0.0
        %1800 = vmatpush1.msra.mxu0 0.0
        %1801 = vmatprep.subr.mxu0 0.0
        %1802 = vmatpush1.msra.mxu0 0.0
        %1803 = vmatprep.subr.mxu0 0.0
        %1804 = vmatpush1.msra.mxu0 0.0
        %1805 = vmatprep.subr.mxu0 0.0
        %1806 = vmatpush1.msra.mxu0 0.0
        %1807 = vmatprep.subr.mxu0 0.0
        %1808 = vmatpush1.msra.mxu0 0.0
        %1809 = vmatprep.subr.mxu0 0.0
        %1810 = vmatpush1.msra.mxu0 0.0
        %1811 = vmatprep.subr.mxu0 0.0
        %1812 = vmatpush1.msra.mxu0 0.0
        %1813 = vmatprep.subr.mxu0 0.0
        %1814 = vmatpush1.msra.mxu0 0.0
        %1815 = vmatprep.subr.mxu0 0.0
        %1816 = vmatpush1.msra.mxu0 0.0
        %1817 = vmatprep.subr.mxu0 0.0
        %1818 = vmatpush1.msra.mxu0 0.0
        %1819 = vmatprep.subr.mxu0 0.0
        %1820 = vmatpush1.msra.mxu0 0.0
        %1821 = vmatprep.subr.mxu0 0.0
        %1822 = vmatpush1.msra.mxu0 0.0
        %1823 = vmatprep.subr.mxu0 0.0
        %1824 = vmatpush1.msra.mxu0 0.0
        %1825 = vmatprep.subr.mxu0 0.0
        %1826 = vmatpush1.msra.mxu0 0.0
        %1827 = vmatprep.subr.mxu0 0.0
        %1828 = vmatpush1.msra.mxu0 0.0
        %1829 = vmatprep.subr.mxu0 0.0
        %1830 = vmatpush1.msra.mxu0 0.0
        %1831 = vmatprep.subr.mxu0 0.0
        %1832 = vmatpush1.msra.mxu0 0.0
        %1833 = vmatprep.subr.mxu0 0.0
        %1834 = vmatpush1.msra.mxu0 0.0
        %1835 = vmatprep.subr.mxu0 0.0
        %1836 = vmatpush1.msra.mxu0 0.0
        %1837 = vmatprep.subr.mxu0 0.0
        %1838 = vmatpush1.msra.mxu0 0.0
        %1839 = vmatprep.mubr.f32.mxu0 0.0
        %1840 = vmatmul.mubr.f32.gmra.mrb[0].mxu0 %v1773
        %v1841 = vpop.f32.mrb[0].mxu0
        %v1842 = vadd.f32 0.0, %v1841
        %v1843 = vpop.f32.mrb[0].mxu0
        %1844 = vdwg.mxu0
        %v1845 = vadd.f32 %v1603, %v1842
        %v1846 = vld [vmem:[%s633] sm:$0x1]
        %v1848 = vlaneseq
        %v1849 = vshrl.u32 %v1848, 7
        %v1850 = vsub.s32 0, %v1849
        %v1851 = vrot.slane %v1846, %v1850
        %v1853 = vadd.f32 %v1845, %v1851
        %v1854 = vadd.f32 %v1853, %v781
        %v1855 = vld [vmem:[%s636] sm:$0x1]
        %v1856 = vld [vmem:[%s639] sm:$0x1]
        %v1857 = vsel %vm800, %v1854, 0.0
        %1858 = vadd.xlane.f32.xlu0 %v1857
        %v1859 = vpop.xlane.xlu0 %1858
        %v1860 = vrcp.pop 32.0
        %v1861 = vmul.f32 %v1859, %v1860
        %v1862 = vsub.f32 %v1854, %v1861
        %v1863 = vmul.f32 %v1862, %v1862
        %v1864 = vsel %vm800, %v1863, 0.0
        %1865 = vadd.xlane.f32.xlu0 %v1864
        %v1866 = vpop.xlane.xlu0 %1865
        %v1867 = vmul.f32 %v1866, %v1860
        %v1868 = vadd.f32 %v1867, 1e-05
        %v1869 = vrsqrt.pop %v1868
        %v1870 = vmul.f32 %v1862, %v1869
        %v1872 = vlaneseq
        %v1873 = vshrl.u32 %v1872, 7
        %v1874 = vsub.s32 0, %v1873
        %v1875 = vrot.slane %v1855, %v1874
        %v1877 = vmul.f32 %v1870, %v1875
        %v1879 = vlaneseq
        %v1880 = vshrl.u32 %v1879, 7
        %v1881 = vsub.s32 0, %v1880
        %v1882 = vrot.slane %v1856, %v1881
        %v1884 = vadd.f32 %v1877, %v1882
        %v1885 = vld [vmem:[%s644] sm:$0xff]
        %v1886 = vld [vmem:[%s644 + $0x8] sm:$0xff]
        %v1887 = vld [vmem:[%s644 + $0x10] sm:$0xff]
        %v1888 = vld [vmem:[%s644 + $0x18] sm:$0xff]
        %v1889 = vld [vmem:[%s647] sm:$0x1]
        %v1891 = vlaneseq
        %v1892 = vshrl.u32 %v1891, 7
        %v1893 = vsub.s32 0, %v1892
        %v1894 = vrot.slane %v1889, %v1893
        %v1897 = vsel %vm800, %v1884, 0
        %1899 = vmatprep.subr.mxu0 0.0
        %1900 = vmatpush1.msra.mxu0 %v1885
        %1901 = vmatprep.subr.mxu0 0.0
        %1902 = vmatpush1.msra.mxu0 %v1886
        %1903 = vmatprep.subr.mxu0 0.0
        %1904 = vmatpush1.msra.mxu0 %v1887
        %1905 = vmatprep.subr.mxu0 0.0
        %1906 = vmatpush1.msra.mxu0 %v1888
        %1907 = vmatprep.subr.mxu0 0.0
        %1908 = vmatpush1.msra.mxu0 0.0
        %1909 = vmatprep.subr.mxu0 0.0
        %1910 = vmatpush1.msra.mxu0 0.0
        %1911 = vmatprep.subr.mxu0 0.0
        %1912 = vmatpush1.msra.mxu0 0.0
        %1913 = vmatprep.subr.mxu0 0.0
        %1914 = vmatpush1.msra.mxu0 0.0
        %1915 = vmatprep.subr.mxu0 0.0
        %1916 = vmatpush1.msra.mxu0 0.0
        %1917 = vmatprep.subr.mxu0 0.0
        %1918 = vmatpush1.msra.mxu0 0.0
        %1919 = vmatprep.subr.mxu0 0.0
        %1920 = vmatpush1.msra.mxu0 0.0
        %1921 = vmatprep.subr.mxu0 0.0
        %1922 = vmatpush1.msra.mxu0 0.0
        %1923 = vmatprep.subr.mxu0 0.0
        %1924 = vmatpush1.msra.mxu0 0.0
        %1925 = vmatprep.subr.mxu0 0.0
        %1926 = vmatpush1.msra.mxu0 0.0
        %1927 = vmatprep.subr.mxu0 0.0
        %1928 = vmatpush1.msra.mxu0 0.0
        %1929 = vmatprep.subr.mxu0 0.0
        %1930 = vmatpush1.msra.mxu0 0.0
        %1931 = vmatprep.subr.mxu0 0.0
        %1932 = vmatpush1.msra.mxu0 0.0
        %1933 = vmatprep.subr.mxu0 0.0
        %1934 = vmatpush1.msra.mxu0 0.0
        %1935 = vmatprep.subr.mxu0 0.0
        %1936 = vmatpush1.msra.mxu0 0.0
        %1937 = vmatprep.subr.mxu0 0.0
        %1938 = vmatpush1.msra.mxu0 0.0
        %1939 = vmatprep.subr.mxu0 0.0
        %1940 = vmatpush1.msra.mxu0 0.0
        %1941 = vmatprep.subr.mxu0 0.0
        %1942 = vmatpush1.msra.mxu0 0.0
        %1943 = vmatprep.subr.mxu0 0.0
        %1944 = vmatpush1.msra.mxu0 0.0
        %1945 = vmatprep.subr.mxu0 0.0
        %1946 = vmatpush1.msra.mxu0 0.0
        %1947 = vmatprep.subr.mxu0 0.0
        %1948 = vmatpush1.msra.mxu0 0.0
        %1949 = vmatprep.subr.mxu0 0.0
        %1950 = vmatpush1.msra.mxu0 0.0
        %1951 = vmatprep.subr.mxu0 0.0
        %1952 = vmatpush1.msra.mxu0 0.0
        %1953 = vmatprep.subr.mxu0 0.0
        %1954 = vmatpush1.msra.mxu0 0.0
        %1955 = vmatprep.subr.mxu0 0.0
        %1956 = vmatpush1.msra.mxu0 0.0
        %1957 = vmatprep.subr.mxu0 0.0
        %1958 = vmatpush1.msra.mxu0 0.0
        %1959 = vmatprep.subr.mxu0 0.0
        %1960 = vmatpush1.msra.mxu0 0.0
        %1961 = vmatprep.subr.mxu0 0.0
        %1962 = vmatpush1.msra.mxu0 0.0
        %1963 = vmatprep.mubr.f32.mxu0 0.0
        %1964 = vmatmul.mubr.f32.gmra.mrb[0].mxu0 %v1897
        %v1965 = vpop.f32.mrb[0].mxu0
        %v1966 = vadd.f32 %v1894, %v1965
        %v1967 = vpop.f32.mrb[0].mxu0
        %1968 = vdwg.mxu0
        %v1969 = vmul.f32 %v1966, 0.5
        %v1970 = vmul.f32 %v1966, 0.044715
        %v1971 = vmul.f32 %v1970, %v1966
        %v1972 = vmul.f32 %v1971, %v1966
        %v1973 = vadd.f32 %v1966, %v1972
        %v1974 = vmul.f32 %v1973, 0.7978846
        %v1975 = vtanh.pop %v1974
        %v1976 = vadd.f32 %v1975, 1.0
        %v1977 = vmul.f32 %v1969, %v1976
        %v1978 = vld [vmem:[%s652] sm:$0xff]
        %v1979 = vld [vmem:[%s652 + $0x8] sm:$0xff]
        %v1980 = vld [vmem:[%s652 + $0x10] sm:$0xff]
        %v1981 = vld [vmem:[%s652 + $0x18] sm:$0xff]
        %v1982 = vld [vmem:[%s652 + $0x20] sm:$0xff]
        %v1983 = vld [vmem:[%s652 + $0x28] sm:$0xff]
        %v1984 = vld [vmem:[%s652 + $0x30] sm:$0xff]
        %v1985 = vld [vmem:[%s652 + $0x38] sm:$0xff]
        %v1986 = vld [vmem:[%s652 + $0x40] sm:$0xff]
        %v1987 = vld [vmem:[%s652 + $0x48] sm:$0xff]
        %v1988 = vld [vmem:[%s652 + $0x50] sm:$0xff]
        %v1989 = vld [vmem:[%s652 + $0x58] sm:$0xff]
        %v1990 = vld [vmem:[%s655] sm:$0x1]
        %v1992 = vlaneseq
        %v1993 = vshrl.u32 %v1992, 7
        %v1994 = vsub.s32 0, %v1993
        %v1995 = vrot.slane %v1990, %v1994
        %vm1997 = vcmask 785408
        %v1999 = vsel %vm1997, %v1977, 0
        %2001 = vmatprep.subr.mxu0 0.0
        %2002 = vmatpush1.msra.mxu0 %v1978
        %2003 = vmatprep.subr.mxu0 0.0
        %2004 = vmatpush1.msra.mxu0 %v1979
        %2005 = vmatprep.subr.mxu0 0.0
        %2006 = vmatpush1.msra.mxu0 %v1980
        %2007 = vmatprep.subr.mxu0 0.0
        %2008 = vmatpush1.msra.mxu0 %v1981
        %2009 = vmatprep.subr.mxu0 0.0
        %2010 = vmatpush1.msra.mxu0 %v1982
        %2011 = vmatprep.subr.mxu0 0.0
        %2012 = vmatpush1.msra.mxu0 %v1983
        %2013 = vmatprep.subr.mxu0 0.0
        %2014 = vmatpush1.msra.mxu0 %v1984
        %2015 = vmatprep.subr.mxu0 0.0
        %2016 = vmatpush1.msra.mxu0 %v1985
        %2017 = vmatprep.subr.mxu0 0.0
        %2018 = vmatpush1.msra.mxu0 %v1986
        %2019 = vmatprep.subr.mxu0 0.0
        %2020 = vmatpush1.msra.mxu0 %v1987
        %2021 = vmatprep.subr.mxu0 0.0
        %2022 = vmatpush1.msra.mxu0 %v1988
        %2023 = vmatprep.subr.mxu0 0.0
        %2024 = vmatpush1.msra.mxu0 %v1989
        %2025 = vmatprep.subr.mxu0 0.0
        %2026 = vmatpush1.msra.mxu0 0.0
        %2027 = vmatprep.subr.mxu0 0.0
        %2028 = vmatpush1.msra.mxu0 0.0
        %2029 = vmatprep.subr.mxu0 0.0
        %2030 = vmatpush1.msra.mxu0 0.0
        %2031 = vmatprep.subr.mxu0 0.0
        %2032 = vmatpush1.msra.mxu0 0.0
        %2033 = vmatprep.subr.mxu0 0.0
        %2034 = vmatpush1.msra.mxu0 0.0
        %2035 = vmatprep.subr.mxu0 0.0
        %2036 = vmatpush1.msra.mxu0 0.0
        %2037 = vmatprep.subr.mxu0 0.0
        %2038 = vmatpush1.msra.mxu0 0.0
        %2039 = vmatprep.subr.mxu0 0.0
        %2040 = vmatpush1.msra.mxu0 0.0
        %2041 = vmatprep.subr.mxu0 0.0
        %2042 = vmatpush1.msra.mxu0 0.0
        %2043 = vmatprep.subr.mxu0 0.0
        %2044 = vmatpush1.msra.mxu0 0.0
        %2045 = vmatprep.subr.mxu0 0.0
        %2046 = vmatpush1.msra.mxu0 0.0
        %2047 = vmatprep.subr.mxu0 0.0
        %2048 = vmatpush1.msra.mxu0 0.0
        %2049 = vmatprep.subr.mxu0 0.0
        %2050 = vmatpush1.msra.mxu0 0.0
        %2051 = vmatprep.subr.mxu0 0.0
        %2052 = vmatpush1.msra.mxu0 0.0
        %2053 = vmatprep.subr.mxu0 0.0
        %2054 = vmatpush1.msra.mxu0 0.0
        %2055 = vmatprep.subr.mxu0 0.0
        %2056 = vmatpush1.msra.mxu0 0.0
        %2057 = vmatprep.subr.mxu0 0.0
        %2058 = vmatpush1.msra.mxu0 0.0
        %2059 = vmatprep.subr.mxu0 0.0
        %2060 = vmatpush1.msra.mxu0 0.0
        %2061 = vmatprep.subr.mxu0 0.0
        %2062 = vmatpush1.msra.mxu0 0.0
        %2063 = vmatprep.subr.mxu0 0.0
        %2064 = vmatpush1.msra.mxu0 0.0
        %2065 = vmatprep.mubr.f32.mxu0 0.0
        %2066 = vmatmul.mubr.f32.gmra.mrb[0].mxu0 %v1999
        %v2067 = vpop.f32.mrb[0].mxu0
        %v2068 = vadd.f32 %v1995, %v2067
        %v2069 = vpop.f32.mrb[0].mxu0
        %2070 = vdwg.mxu0
        %v2071 = vadd.f32 %v2068, %v1884
        %v2072 = vld [vmem:[%s658] sm:$0x1]
        %v2073 = vld [vmem:[%s661] sm:$0x1]
        %v2074 = vsel %vm800, %v2071, 0.0
        %2075 = vadd.xlane.f32.xlu0 %v2074
        %v2076 = vpop.xlane.xlu0 %2075
        %v2077 = vmul.f32 %v2076, %v1860
        %v2078 = vsub.f32 %v2071, %v2077
        %v2079 = vmul.f32 %v2078, %v2078
        %v2080 = vsel %vm800, %v2079, 0.0
        %2081 = vadd.xlane.f32.xlu0 %v2080
        %v2082 = vpop.xlane.xlu0 %2081
        %v2083 = vmul.f32 %v2082, %v1860
        %v2084 = vadd.f32 %v2083, 1e-05
        %v2085 = vrsqrt.pop %v2084
        %v2086 = vmul.f32 %v2078, %v2085
        %v2088 = vlaneseq
        %v2089 = vshrl.u32 %v2088, 7
        %v2090 = vsub.s32 0, %v2089
        %v2091 = vrot.slane %v2072, %v2090
        %v2093 = vmul.f32 %v2086, %v2091
        %v2095 = vlaneseq
        %v2096 = vshrl.u32 %v2095, 7
        %v2097 = vsub.s32 0, %v2096
        %v2098 = vrot.slane %v2073, %v2097
        %v2100 = vadd.f32 %v2093, %v2098
        %2101 = vst.msk [vmem:[#allocation2] sm:$0xff] %vm800, %v2100
        %p2102 = scmp.eq.s32.totalorder %s46, 1
        // Predicated region
        $region148: #{transformer_decoder.1} parent=75 // pred_check
          %p2103 = pneg %p2102
        $region149: #{transformer_decoder.1} parent=75 // pred_check_branch
          %2105 = sbr.rel (%p2103) target = $region151
        $region150: #{transformer_decoder.1} parent=75 // pred_region
          %s2106 = sld [smem:[#allocation7 + %s45]]
          %s2107 = scalar_lea.vmem [#allocation2], %s2106
          %v2108 = vld [vmem:[%s2107] sm:$0x1]
          %v2109 = vld [vmem:[%s15] sm:$0xff]
          %v2110 = vld [vmem:[%s15 + $0x8] sm:$0xff]
          %v2111 = vld [vmem:[%s15 + $0x10] sm:$0xff]
          %v2112 = vld [vmem:[%s15 + $0x18] sm:$0xff]
          %v2113 = vld [vmem:[%s16] sm:$0x1]
          %v2115 = vsel %vm800, %v2108, 0
          %2117 = vmatprep.subr.mxu0 0.0
          %2118 = vmatpush1.msra.mxu0 %v2109
          %2119 = vmatprep.subr.mxu0 0.0
          %2120 = vmatpush1.msra.mxu0 %v2110
          %2121 = vmatprep.subr.mxu0 0.0
          %2122 = vmatpush1.msra.mxu0 %v2111
          %2123 = vmatprep.subr.mxu0 0.0
          %2124 = vmatpush1.msra.mxu0 %v2112
          %2125 = vmatprep.subr.mxu0 0.0
          %2126 = vmatpush1.msra.mxu0 0.0
          %2127 = vmatprep.subr.mxu0 0.0
          %2128 = vmatpush1.msra.mxu0 0.0
          %2129 = vmatprep.subr.mxu0 0.0
          %2130 = vmatpush1.msra.mxu0 0.0
          %2131 = vmatprep.subr.mxu0 0.0
          %2132 = vmatpush1.msra.mxu0 0.0
          %2133 = vmatprep.subr.mxu0 0.0
          %2134 = vmatpush1.msra.mxu0 0.0
          %2135 = vmatprep.subr.mxu0 0.0
          %2136 = vmatpush1.msra.mxu0 0.0
          %2137 = vmatprep.subr.mxu0 0.0
          %2138 = vmatpush1.msra.mxu0 0.0
          %2139 = vmatprep.subr.mxu0 0.0
          %2140 = vmatpush1.msra.mxu0 0.0
          %2141 = vmatprep.subr.mxu0 0.0
          %2142 = vmatpush1.msra.mxu0 0.0
          %2143 = vmatprep.subr.mxu0 0.0
          %2144 = vmatpush1.msra.mxu0 0.0
          %2145 = vmatprep.subr.mxu0 0.0
          %2146 = vmatpush1.msra.mxu0 0.0
          %2147 = vmatprep.subr.mxu0 0.0
          %2148 = vmatpush1.msra.mxu0 0.0
          %2149 = vmatprep.subr.mxu0 0.0
          %2150 = vmatpush1.msra.mxu0 0.0
          %2151 = vmatprep.subr.mxu0 0.0
          %2152 = vmatpush1.msra.mxu0 0.0
          %2153 = vmatprep.subr.mxu0 0.0
          %2154 = vmatpush1.msra.mxu0 0.0
          %2155 = vmatprep.subr.mxu0 0.0
          %2156 = vmatpush1.msra.mxu0 0.0
          %2157 = vmatprep.subr.mxu0 0.0
          %2158 = vmatpush1.msra.mxu0 0.0
          %2159 = vmatprep.subr.mxu0 0.0
          %2160 = vmatpush1.msra.mxu0 0.0
          %2161 = vmatprep.subr.mxu0 0.0
          %2162 = vmatpush1.msra.mxu0 0.0
          %2163 = vmatprep.subr.mxu0 0.0
          %2164 = vmatpush1.msra.mxu0 0.0
          %2165 = vmatprep.subr.mxu0 0.0
          %2166 = vmatpush1.msra.mxu0 0.0
          %2167 = vmatprep.subr.mxu0 0.0
          %2168 = vmatpush1.msra.mxu0 0.0
          %2169 = vmatprep.subr.mxu0 0.0
          %2170 = vmatpush1.msra.mxu0 0.0
          %2171 = vmatprep.subr.mxu0 0.0
          %2172 = vmatpush1.msra.mxu0 0.0
          %2173 = vmatprep.subr.mxu0 0.0
          %2174 = vmatpush1.msra.mxu0 0.0
          %2175 = vmatprep.subr.mxu0 0.0
          %2176 = vmatpush1.msra.mxu0 0.0
          %2177 = vmatprep.subr.mxu0 0.0
          %2178 = vmatpush1.msra.mxu0 0.0
          %2179 = vmatprep.subr.mxu0 0.0
          %2180 = vmatpush1.msra.mxu0 0.0
          %2181 = vmatprep.mubr.f32.mxu0 0.0
          %2182 = vmatmul.mubr.f32.gmra.mrb[0].mxu0 %v2115
          %v2183 = vpop.f32.mrb[0].mxu0
          %v2184 = vadd.f32 %v2113, %v2183
          %v2185 = vpop.f32.mrb[0].mxu0
          %2186 = vdwg.mxu0
          %2187 = vst [vmem:[%s617] sm:$0x1] %v2184
        $region151: #{transformer_decoder.1} parent=75 // pred_fallthru
          _
        %s2188 = sand.u32 %s415, 1
        %s2189 = scalar_lea.sflag [#allocation9], %s2188
        %s2190 = sand.u32 %s415, 1
        %s2191 = scalar_lea.vmem [#allocation8], %s2190
        // Predicated region
        $region152: #{transformer_decoder.1} parent=75 // pred_check
          %p2192 = pneg %p425
        $region153: #{transformer_decoder.1} parent=75 // pred_check_branch
          %2194 = sbr.rel (%p2192) target = $region155
        $region154: #{transformer_decoder.1} parent=75 // pred_region
          %s2196 = ssub.s32 16, 16
          %2197 = vsyncadd %s2189, %s2196
          %s2198 = smul.addr %s45, 16
          %s2199 = scalar_lea.hbm %s17, %s2198
          %s2201 = sshll.u32 %s2191, 4
          %s2202 = int_to_ptr.vmem [resolvable:$true] %s2201
          %2204 = dma.vmem_to_hbm [thread:$0]  %s2202, 16, %s2199, %s2189
        $region155: #{transformer_decoder.1} parent=75 // pred_fallthru
          _
      $region76: #{transformer_decoder.1} parent=5 // pred_fallthru
        _
      %p2205 = scmp.le.s32.totalorder 2, %s36
      // Predicated region
      $region156: #{transformer_decoder.1} parent=5 // pred_check
        %p2206 = pneg %p2205
      $region157: #{transformer_decoder.1} parent=5 // pred_check_branch
        %2208 = sbr.rel (%p2206) target = $region159
      $region158: #{transformer_decoder.1} parent=5 // pred_region
        %s2209 = ssub.s32 %s36, 2
        // Predicated region
        $region160: #{transformer_decoder.1} parent=158 // pred_check
          %p2210 = pneg %p431
        $region161: #{transformer_decoder.1} parent=158 // pred_check_branch
          %2212 = sbr.rel (%p2210) target = $region163
        $region162: #{transformer_decoder.1} parent=158 // pred_region
          %s2213 = sand.u32 %s416, 1
          %s2214 = scalar_lea.sflag [#allocation9], %s2213
          %s2215 = sand.u32 %s416, 1
          %s2216 = scalar_lea.vmem [#allocation8], %s2215
          %2217 = dma.done %s2214, 16
        $region163: #{transformer_decoder.1} parent=158 // pred_fallthru
          _
      $region159: #{transformer_decoder.1} parent=5 // pred_fallthru
        _
    $region6: #{transformer_decoder.1} parent=1 // loop_footer
      %s40 = sadd.s32 1, %s36
    $region7: #{transformer_decoder.1} parent=1 // loop_footer_branch
      %35 = sbr.rel target = $region3
    $region8: #{transformer_decoder.1} parent=1 // loop_exit
      _
    %2218 = vsyncpa [#allocation9], 1
    %s2219 = scalar_lea.sflag [#allocation9], 1
    %2220 = vsyncpa %s2219, 1
  %2221 = vsyncmov [#allocation4]
  %s2222 = vpop.sfrf %2221
  %p2223 = scmp.eq.s32.totalorder %s2222, 0
  %p2224 = pneg %p2223
  %2226 = shalt.err (%p2224)
  %s2227 = scalar_lea.sflag [#allocation4], 1
  %2228 = vsyncmov %s2227
  %s2229 = vpop.sfrf %2228
  %p2230 = scmp.eq.s32.totalorder %s2229, 0
  %p2231 = pneg %p2230
  %2233 = shalt.err (%p2231)

</llo_original>
